<compile_context>
chip_gen: v6e
topology: v6e:2x2x1
jax: 0.10.0
libtpu: 0.0.40
codegen_flags: <defaults>
</compile_context>

<pallas_src>
import functools

import jax
import jax.numpy as jnp
from jax.experimental import pallas as pl
from jax.experimental.pallas import tpu as pltpu

INPUT_DIM = 2
OUTPUT_DIM = 2
BN_EPS = 1e-5
LANE = 128


def _topnet_kernel(x_ref, w0_ref, wh_ref, b_ref, g_ref, be_ref,
                   dw_ref, db_ref, fixed_ref, rho_ref, h_ref,
                   *, num_layers, nelx, nely, sym_x, sym_y):
    """Whole TopNet forward in a single invocation (no grid).

    h_ref is the carried (N, H_pad) activation in VMEM.  H is zero-padded to a
    128-lane multiple in the wrapper; padded columns stay identically zero
    through every layer, so results match the unpadded model exactly.
    """
    # ---- layer 0: symmetry fold + (N,2)@(2,Hp) as two broadcast FMAs (VPU) --
    x = x_ref[...]                              # (N, 2) raw coordinates
    xv = x[:, 0:1]                              # (N, 1)
    yv = x[:, 1:2]                              # (N, 1)
    if sym_y:                                   # fold about the vertical axis
        xv = 0.5 * nelx + jnp.abs(xv - 0.5 * nelx)
    if sym_x:                                   # fold about the horizontal axis
        yv = 0.5 * nely + jnp.abs(yv - 0.5 * nely)
    w0 = w0_ref[...]                            # (2, Hp); K=2 is MXU-hostile
    h_ref[...] = xv * w0[0:1, :] + yv * w0[1:2, :]

    def bn_relu6(l):
        # Training-mode BatchNorm1d (full-batch stats, biased variance) + ReLU6,
        # applied in place on h_ref (two reads instead of (N,Hp) z/d temps).
        h_ref[...] = h_ref[...] + b_ref[l:l + 1, :]           # z = Wx + b
        z = h_ref[...]
        mean = jnp.mean(z, axis=0, keepdims=True)             # (1, Hp)
        d = z - mean
        var = jnp.mean(d * d, axis=0, keepdims=True)          # biased variance
        scale = g_ref[l:l + 1, :] * jax.lax.rsqrt(var + BN_EPS)
        h_ref[...] = jnp.clip(
            (h_ref[...] - mean) * scale + be_ref[l:l + 1, :], 0.0, 6.0)

    bn_relu6(0)

    # ---- hidden layers: lane-dense (Hp,Hp) MXU matmuls, weights resident -----
    for l in range(1, num_layers):              # static unroll (small, fixed L)
        h_ref[...] = jnp.dot(h_ref[...], wh_ref[l - 1],
                             preferred_element_type=jnp.float32)
        bn_relu6(l)

    # ---- head: softmax(z)[:,0] == sigmoid(z0 - z1); lane-dense (1, N) row ----
    t = jax.lax.dot_general(
        dw_ref[...], h_ref[...], (((1,), (1,)), ((), ())),
        preferred_element_type=jnp.float32) + db_ref[0]        # (1, N)
    rho = 0.01 + pl.reciprocal(1.0 + jnp.exp(-t), approx=True)  # EUP recip
    fixed = fixed_ref[...]                                      # (1, N)
    rho_ref[...] = (1.0 - fixed) * rho + fixed * (rho + jnp.abs(1.0 - rho))


def init_params(key, num_layers, hidden):
    """Deterministic Xavier-normal weights, zero biases, BN gamma=1 / beta=0."""
    keys = jax.random.split(key, 3)
    std0 = (2.0 / (INPUT_DIM + hidden)) ** 0.5
    w0 = std0 * jax.random.normal(keys[0], (INPUT_DIM, hidden), jnp.float32)
    stdh = (2.0 / (hidden + hidden)) ** 0.5
    n_hidden_mats = max(num_layers - 1, 1)
    wh = stdh * jax.random.normal(keys[1], (n_hidden_mats, hidden, hidden),
                                  jnp.float32)
    if num_layers == 1:            # dummy block, never read by the kernel
        wh = jnp.zeros_like(wh)
    b = jnp.zeros((num_layers, hidden), jnp.float32)
    gamma = jnp.ones((num_layers, hidden), jnp.float32)
    beta = jnp.zeros((num_layers, hidden), jnp.float32)
    stdl = (2.0 / (hidden + OUTPUT_DIM)) ** 0.5
    wl = stdl * jax.random.normal(keys[2], (hidden, OUTPUT_DIM), jnp.float32)
    bl = jnp.zeros((OUTPUT_DIM,), jnp.float32)
    return w0, wh, b, gamma, beta, wl, bl


def topnet_forward(x, fixed_idx, params, *, nelx, nely,
                   sym_x_axis, sym_y_axis):
    """x: (N, 2) coords, fixed_idx: (N,) float 0/1 mask -> rho: (N,)"""
    w0, wh, b, gamma, beta, wl, bl = params
    num_layers = b.shape[0]
    hidden = w0.shape[1]
    n = x.shape[0]
    hp = ((hidden + LANE - 1) // LANE) * LANE     # pad hidden to full 128 lanes

    x = x.astype(jnp.float32)
    fixed = fixed_idx.astype(jnp.float32).reshape(1, n)        # lane-dense row

    # Zero-pad the hidden width so all VPU/MXU/BN work is lane-dense.  Padded
    # columns have zero weight/bias/gamma/beta -> z=0 -> d=0 -> h=0, so they
    # stay inert through every layer (exactly the H=hidden model).
    w0_p = jnp.zeros((INPUT_DIM, hp), jnp.float32).at[:, :hidden].set(w0)
    wh_p = (jnp.zeros((wh.shape[0], hp, hp), jnp.float32)
            .at[:, :hidden, :hidden].set(wh))
    b_p = jnp.zeros((num_layers, hp), jnp.float32).at[:, :hidden].set(b)
    g_p = jnp.zeros((num_layers, hp), jnp.float32).at[:, :hidden].set(gamma)
    be_p = jnp.zeros((num_layers, hp), jnp.float32).at[:, :hidden].set(beta)

    # Fold the 2-class softmax head:  softmax(z)[:, 0] = sigmoid(z0 - z1).
    dw_p = (jnp.zeros((1, hp), jnp.float32)
            .at[0, :hidden].set(wl[:, 0] - wl[:, 1]))
    db = (bl[0] - bl[1]).astype(jnp.float32).reshape(1)        # SMEM scalar

    kernel = functools.partial(
        _topnet_kernel, num_layers=num_layers,
        nelx=float(nelx), nely=float(nely),
        sym_x=bool(sym_x_axis), sym_y=bool(sym_y_axis))

    vmem = pl.BlockSpec(memory_space=pltpu.MemorySpace.VMEM)
    smem = pl.BlockSpec(memory_space=pltpu.MemorySpace.SMEM)

    flops = (2 * n * hp * (INPUT_DIM + 1)
             + 2 * n * hp * hp * max(num_layers - 1, 0)
             + 10 * n * hp * num_layers)
    transcendentals = 2 * n + num_layers * hp
    bytes_accessed = 4 * (x.size + fixed.size + n + w0_p.size + wh_p.size
                          + b_p.size + g_p.size + be_p.size + dw_p.size + 1
                          + 6 * num_layers * n * hp)   # carried-scratch traffic

    rho = pl.pallas_call(
        kernel,
        out_shape=jax.ShapeDtypeStruct((1, n), jnp.float32),
        in_specs=[vmem,   # x            (N, 2)
                  vmem,   # w0           (2, Hp)
                  vmem,   # wh           (L-1, Hp, Hp)
                  vmem,   # bias         (L, Hp)
                  vmem,   # gamma        (L, Hp)
                  vmem,   # beta         (L, Hp)
                  vmem,   # dw (head)    (1, Hp)
                  smem,   # db (head)    (1,) scalar
                  vmem],  # fixed mask   (1, N)
        out_specs=vmem,
        scratch_shapes=[pltpu.VMEM((n, hp), jnp.float32)],     # carried h
        compiler_params=pltpu.CompilerParams(
            vmem_limit_bytes=32 * 1024 * 1024),                # safe v5e/v6e/v7x
        cost_estimate=pl.CostEstimate(
            flops=flops, transcendentals=transcendentals,
            bytes_accessed=bytes_accessed),
    )(x, w0_p, wh_p, b_p, g_p, be_p, dw_p, db, fixed)
    return rho[0]


def _topnet_ref(x, fixed_idx, params, *, nelx, nely, sym_x_axis, sym_y_axis):
    """Pure-JAX reference mirroring the PyTorch forward (for sanity checking)."""
    w0, wh, b, gamma, beta, wl, bl = params
    num_layers = b.shape[0]
    xv = x[:, 0]
    yv = x[:, 1]
    if sym_y_axis:
        xv = 0.5 * nelx + jnp.abs(xv - 0.5 * nelx)
    if sym_x_axis:
        yv = 0.5 * nely + jnp.abs(yv - 0.5 * nely)
    h = jnp.stack([xv, yv], axis=1)
    for l in range(num_layers):
        w = w0 if l == 0 else wh[l - 1]
        z = h @ w + b[l]
        mean = jnp.mean(z, axis=0)
        var = jnp.mean((z - mean) ** 2, axis=0)
        zn = gamma[l] * (z - mean) / jnp.sqrt(var + BN_EPS) + beta[l]
        h = jnp.clip(zn, 0.0, 6.0)
    out = 0.01 + jax.nn.softmax(h @ wl + bl, axis=1)
    rho = out[:, 0]
    return (1.0 - fixed_idx) * rho + fixed_idx * (rho + jnp.abs(1.0 - rho))


if __name__ == "__main__":
    NELX, NELY = 16, 16          # small version of the 128x128 design domain
    NUM_LAYERS = 5
    HIDDEN = 20                  # numNeuronsPerLyr
    N = 64                       # batch of element-center coordinates

    key = jax.random.PRNGKey(0)
    kx, kf, kp = jax.random.split(key, 3)
    x = jax.random.uniform(kx, (N, 2), jnp.float32, 0.0, float(NELX))
    fixed_idx = (jax.random.uniform(kf, (N,)) < 0.2).astype(jnp.float32)
    params = init_params(kp, NUM_LAYERS, HIDDEN)

    rho = topnet_forward(x, fixed_idx, params, nelx=NELX, nely=NELY,
                         sym_x_axis=True, sym_y_axis=True)
    jax.block_until_ready(rho)
    assert rho.shape == (N,)

    rho_ref = _topnet_ref(x, fixed_idx, params, nelx=NELX, nely=NELY,
                          sym_x_axis=True, sym_y_axis=True)
    # atol widened slightly vs. 1e-3: the head uses the EUP approximate
    # reciprocal (relative error ~1e-4) for the sigmoid.
    assert jnp.allclose(rho, rho_ref, rtol=1e-3, atol=2e-3), (
        float(jnp.max(jnp.abs(rho - rho_ref))))
    print("KERNEL_OK")
</pallas_src>

<mosaic_0001>
module attributes {stable_mosaic.version = 11 : i64} {
  func.func @_topnet_kernel(%arg0: memref<64x2xf32, #tpu.memory_space<vmem>>, %arg1: memref<2x128xf32, #tpu.memory_space<vmem>>, %arg2: memref<4x128x128xf32, #tpu.memory_space<vmem>>, %arg3: memref<5x128xf32, #tpu.memory_space<vmem>>, %arg4: memref<5x128xf32, #tpu.memory_space<vmem>>, %arg5: memref<5x128xf32, #tpu.memory_space<vmem>>, %arg6: memref<1x128xf32, #tpu.memory_space<vmem>>, %arg7: memref<1xf32, #tpu.memory_space<smem>>, %arg8: memref<1x64xf32, #tpu.memory_space<vmem>>, %arg9: memref<1x64xf32, #tpu.memory_space<vmem>>, %arg10: memref<64x128xf32, #tpu.memory_space<vmem>>) attributes {dimension_semantics = [], scalar_prefetch = 0 : i64, scratch_operands = 1 : i64, tpu.core_type = #tpu.core_type<tc>} {
    %c0 = arith.constant 0 : index
    %c0_0 = arith.constant 0 : index
    %0 = vector.load %arg0[%c0, %c0_0] : memref<64x2xf32, #tpu.memory_space<vmem>>, vector<64x2xf32>
    %1 = vector.extract_strided_slice %0 {offsets = [0, 0], sizes = [64, 1], strides = [1, 1]} : vector<64x2xf32> to vector<64x1xf32>
    %2 = vector.extract_strided_slice %0 {offsets = [0, 1], sizes = [64, 1], strides = [1, 1]} : vector<64x2xf32> to vector<64x1xf32>
    %cst = arith.constant 8.000000e+00 : f32
    %3 = vector.broadcast %cst : f32 to vector<64x1xf32>
    %4 = arith.subf %1, %3 : vector<64x1xf32>
    %5 = math.absf %4 : vector<64x1xf32>
    %cst_1 = arith.constant 8.000000e+00 : f32
    %6 = vector.broadcast %cst_1 : f32 to vector<64x1xf32>
    %7 = arith.addf %6, %5 : vector<64x1xf32>
    %cst_2 = arith.constant 8.000000e+00 : f32
    %8 = vector.broadcast %cst_2 : f32 to vector<64x1xf32>
    %9 = arith.subf %2, %8 : vector<64x1xf32>
    %10 = math.absf %9 : vector<64x1xf32>
    %cst_3 = arith.constant 8.000000e+00 : f32
    %11 = vector.broadcast %cst_3 : f32 to vector<64x1xf32>
    %12 = arith.addf %11, %10 : vector<64x1xf32>
    %c0_4 = arith.constant 0 : index
    %c0_5 = arith.constant 0 : index
    %13 = vector.load %arg1[%c0_4, %c0_5] : memref<2x128xf32, #tpu.memory_space<vmem>>, vector<2x128xf32>
    %14 = vector.extract_strided_slice %13 {offsets = [0, 0], sizes = [1, 128], strides = [1, 1]} : vector<2x128xf32> to vector<1x128xf32>
    %15 = vector.broadcast %7 : vector<64x1xf32> to vector<64x128xf32>
    %16 = vector.broadcast %14 : vector<1x128xf32> to vector<64x128xf32>
    %17 = arith.mulf %15, %16 : vector<64x128xf32>
    %18 = vector.extract_strided_slice %13 {offsets = [1, 0], sizes = [1, 128], strides = [1, 1]} : vector<2x128xf32> to vector<1x128xf32>
    %19 = vector.broadcast %12 : vector<64x1xf32> to vector<64x128xf32>
    %20 = vector.broadcast %18 : vector<1x128xf32> to vector<64x128xf32>
    %21 = arith.mulf %19, %20 : vector<64x128xf32>
    %22 = arith.addf %17, %21 : vector<64x128xf32>
    %c0_6 = arith.constant 0 : index
    %c0_7 = arith.constant 0 : index
    %23 = vector.load %arg10[%c0_6, %c0_7] : memref<64x128xf32, #tpu.memory_space<vmem>>, vector<64x128xf32>
    tpu.vector_store %arg10[%c0_6, %c0_7], %22 {strides = array<i32>} : memref<64x128xf32, #tpu.memory_space<vmem>>, vector<64x128xf32>,
    %c0_8 = arith.constant 0 : index
    %c0_9 = arith.constant 0 : index
    %24 = vector.load %arg10[%c0_8, %c0_9] : memref<64x128xf32, #tpu.memory_space<vmem>>, vector<64x128xf32>
    %c0_10 = arith.constant 0 : index
    %c0_11 = arith.constant 0 : index
    %25 = vector.load %arg3[%c0_10, %c0_11] : memref<5x128xf32, #tpu.memory_space<vmem>>, vector<1x128xf32>
    %26 = vector.broadcast %25 : vector<1x128xf32> to vector<64x128xf32>
    %27 = arith.addf %24, %26 : vector<64x128xf32>
    %c0_12 = arith.constant 0 : index
    %c0_13 = arith.constant 0 : index
    %28 = vector.load %arg10[%c0_12, %c0_13] : memref<64x128xf32, #tpu.memory_space<vmem>>, vector<64x128xf32>
    tpu.vector_store %arg10[%c0_12, %c0_13], %27 {strides = array<i32>} : memref<64x128xf32, #tpu.memory_space<vmem>>, vector<64x128xf32>,
    %c0_14 = arith.constant 0 : index
    %c0_15 = arith.constant 0 : index
    %29 = vector.load %arg10[%c0_14, %c0_15] : memref<64x128xf32, #tpu.memory_space<vmem>>, vector<64x128xf32>
    %cst_16 = arith.constant dense<0.000000e+00> : vector<128xf32>
    %30 = vector.multi_reduction <add>, %29, %cst_16 [0] : vector<64x128xf32> to vector<128xf32>
    %31 = vector.shape_cast %30 : vector<128xf32> to vector<1x128xf32>
    %cst_17 = arith.constant 6.400000e+01 : f32
    %32 = vector.broadcast %cst_17 : f32 to vector<1x128xf32>
    %33 = arith.divf %31, %32 : vector<1x128xf32>
    %34 = vector.broadcast %33 : vector<1x128xf32> to vector<64x128xf32>
    %35 = arith.subf %29, %34 : vector<64x128xf32>
    %36 = arith.mulf %35, %35 : vector<64x128xf32>
    %cst_18 = arith.constant dense<0.000000e+00> : vector<128xf32>
    %37 = vector.multi_reduction <add>, %36, %cst_18 [0] : vector<64x128xf32> to vector<128xf32>
    %38 = vector.shape_cast %37 : vector<128xf32> to vector<1x128xf32>
    %cst_19 = arith.constant 6.400000e+01 : f32
    %39 = vector.broadcast %cst_19 : f32 to vector<1x128xf32>
    %40 = arith.divf %38, %39 : vector<1x128xf32>
    %c0_20 = arith.constant 0 : index
    %c0_21 = arith.constant 0 : index
    %41 = vector.load %arg4[%c0_20, %c0_21] : memref<5x128xf32, #tpu.memory_space<vmem>>, vector<1x128xf32>
    %cst_22 = arith.constant 9.99999974E-6 : f32
    %42 = vector.broadcast %cst_22 : f32 to vector<1x128xf32>
    %43 = arith.addf %40, %42 : vector<1x128xf32>
    %44 = math.rsqrt %43 : vector<1x128xf32>
    %45 = arith.mulf %41, %44 : vector<1x128xf32>
    %c0_23 = arith.constant 0 : index
    %c0_24 = arith.constant 0 : index
    %46 = vector.load %arg10[%c0_23, %c0_24] : memref<64x128xf32, #tpu.memory_space<vmem>>, vector<64x128xf32>
    %47 = vector.broadcast %33 : vector<1x128xf32> to vector<64x128xf32>
    %48 = arith.subf %46, %47 : vector<64x128xf32>
    %49 = vector.broadcast %45 : vector<1x128xf32> to vector<64x128xf32>
    %50 = arith.mulf %48, %49 : vector<64x128xf32>
    %c0_25 = arith.constant 0 : index
    %c0_26 = arith.constant 0 : index
    %51 = vector.load %arg5[%c0_25, %c0_26] : memref<5x128xf32, #tpu.memory_space<vmem>>, vector<1x128xf32>
    %52 = vector.broadcast %51 : vector<1x128xf32> to vector<64x128xf32>
    %53 = arith.addf %50, %52 : vector<64x128xf32>
    %cst_27 = arith.constant 0.000000e+00 : f32
    %cst_28 = arith.constant 6.000000e+00 : f32
    %54 = vector.broadcast %cst_27 : f32 to vector<64x128xf32>
    %55 = arith.maximumf %54, %53 : vector<64x128xf32>
    %56 = vector.broadcast %cst_28 : f32 to vector<64x128xf32>
    %57 = arith.minimumf %56, %55 : vector<64x128xf32>
    %c0_29 = arith.constant 0 : index
    %c0_30 = arith.constant 0 : index
    %58 = vector.load %arg10[%c0_29, %c0_30] : memref<64x128xf32, #tpu.memory_space<vmem>>, vector<64x128xf32>
    tpu.vector_store %arg10[%c0_29, %c0_30], %57 {strides = array<i32>} : memref<64x128xf32, #tpu.memory_space<vmem>>, vector<64x128xf32>,
    %c0_31 = arith.constant 0 : index
    %c0_32 = arith.constant 0 : index
    %59 = vector.load %arg10[%c0_31, %c0_32] : memref<64x128xf32, #tpu.memory_space<vmem>>, vector<64x128xf32>
    %c0_33 = arith.constant 0 : index
    %c0_34 = arith.constant 0 : index
    %c0_35 = arith.constant 0 : index
    %60 = vector.load %arg2[%c0_33, %c0_34, %c0_35] : memref<4x128x128xf32, #tpu.memory_space<vmem>>, vector<1x128x128xf32>
    %61 = vector.shape_cast %60 : vector<1x128x128xf32> to vector<128x128xf32>
    %cst_36 = arith.constant dense<0.000000e+00> : vector<64x128xf32>
    %62 = tpu.matmul %59, %61, %cst_36 {dimension_numbers = #tpu.dot_dimension_numbers<[1], [0], [0], [1], [0, 0, 1, 1], [], []>} : vector<64x128xf32>, vector<128x128xf32>, vector<64x128xf32> -> vector<64x128xf32>
    %c0_37 = arith.constant 0 : index
    %c0_38 = arith.constant 0 : index
    %63 = vector.load %arg10[%c0_37, %c0_38] : memref<64x128xf32, #tpu.memory_space<vmem>>, vector<64x128xf32>
    tpu.vector_store %arg10[%c0_37, %c0_38], %62 {strides = array<i32>} : memref<64x128xf32, #tpu.memory_space<vmem>>, vector<64x128xf32>,
    %c0_39 = arith.constant 0 : index
    %c0_40 = arith.constant 0 : index
    %64 = vector.load %arg10[%c0_39, %c0_40] : memref<64x128xf32, #tpu.memory_space<vmem>>, vector<64x128xf32>
    %c1 = arith.constant 1 : index
    %c0_41 = arith.constant 0 : index
    %65 = vector.load %arg3[%c1, %c0_41] : memref<5x128xf32, #tpu.memory_space<vmem>>, vector<1x128xf32>
    %66 = vector.broadcast %65 : vector<1x128xf32> to vector<64x128xf32>
    %67 = arith.addf %64, %66 : vector<64x128xf32>
    %c0_42 = arith.constant 0 : index
    %c0_43 = arith.constant 0 : index
    %68 = vector.load %arg10[%c0_42, %c0_43] : memref<64x128xf32, #tpu.memory_space<vmem>>, vector<64x128xf32>
    tpu.vector_store %arg10[%c0_42, %c0_43], %67 {strides = array<i32>} : memref<64x128xf32, #tpu.memory_space<vmem>>, vector<64x128xf32>,
    %c0_44 = arith.constant 0 : index
    %c0_45 = arith.constant 0 : index
    %69 = vector.load %arg10[%c0_44, %c0_45] : memref<64x128xf32, #tpu.memory_space<vmem>>, vector<64x128xf32>
    %cst_46 = arith.constant dense<0.000000e+00> : vector<128xf32>
    %70 = vector.multi_reduction <add>, %69, %cst_46 [0] : vector<64x128xf32> to vector<128xf32>
    %71 = vector.shape_cast %70 : vector<128xf32> to vector<1x128xf32>
    %cst_47 = arith.constant 6.400000e+01 : f32
    %72 = vector.broadcast %cst_47 : f32 to vector<1x128xf32>
    %73 = arith.divf %71, %72 : vector<1x128xf32>
    %74 = vector.broadcast %73 : vector<1x128xf32> to vector<64x128xf32>
    %75 = arith.subf %69, %74 : vector<64x128xf32>
    %76 = arith.mulf %75, %75 : vector<64x128xf32>
    %cst_48 = arith.constant dense<0.000000e+00> : vector<128xf32>
    %77 = vector.multi_reduction <add>, %76, %cst_48 [0] : vector<64x128xf32> to vector<128xf32>
    %78 = vector.shape_cast %77 : vector<128xf32> to vector<1x128xf32>
    %cst_49 = arith.constant 6.400000e+01 : f32
    %79 = vector.broadcast %cst_49 : f32 to vector<1x128xf32>
    %80 = arith.divf %78, %79 : vector<1x128xf32>
    %c1_50 = arith.constant 1 : index
    %c0_51 = arith.constant 0 : index
    %81 = vector.load %arg4[%c1_50, %c0_51] : memref<5x128xf32, #tpu.memory_space<vmem>>, vector<1x128xf32>
    %cst_52 = arith.constant 9.99999974E-6 : f32
    %82 = vector.broadcast %cst_52 : f32 to vector<1x128xf32>
    %83 = arith.addf %80, %82 : vector<1x128xf32>
    %84 = math.rsqrt %83 : vector<1x128xf32>
    %85 = arith.mulf %81, %84 : vector<1x128xf32>
    %c0_53 = arith.constant 0 : index
    %c0_54 = arith.constant 0 : index
    %86 = vector.load %arg10[%c0_53, %c0_54] : memref<64x128xf32, #tpu.memory_space<vmem>>, vector<64x128xf32>
    %87 = vector.broadcast %73 : vector<1x128xf32> to vector<64x128xf32>
    %88 = arith.subf %86, %87 : vector<64x128xf32>
    %89 = vector.broadcast %85 : vector<1x128xf32> to vector<64x128xf32>
    %90 = arith.mulf %88, %89 : vector<64x128xf32>
    %c1_55 = arith.constant 1 : index
    %c0_56 = arith.constant 0 : index
    %91 = vector.load %arg5[%c1_55, %c0_56] : memref<5x128xf32, #tpu.memory_space<vmem>>, vector<1x128xf32>
    %92 = vector.broadcast %91 : vector<1x128xf32> to vector<64x128xf32>
    %93 = arith.addf %90, %92 : vector<64x128xf32>
    %cst_57 = arith.constant 0.000000e+00 : f32
    %cst_58 = arith.constant 6.000000e+00 : f32
    %94 = vector.broadcast %cst_57 : f32 to vector<64x128xf32>
    %95 = arith.maximumf %94, %93 : vector<64x128xf32>
    %96 = vector.broadcast %cst_58 : f32 to vector<64x128xf32>
    %97 = arith.minimumf %96, %95 : vector<64x128xf32>
    %c0_59 = arith.constant 0 : index
    %c0_60 = arith.constant 0 : index
    %98 = vector.load %arg10[%c0_59, %c0_60] : memref<64x128xf32, #tpu.memory_space<vmem>>, vector<64x128xf32>
    tpu.vector_store %arg10[%c0_59, %c0_60], %97 {strides = array<i32>} : memref<64x128xf32, #tpu.memory_space<vmem>>, vector<64x128xf32>,
    %c0_61 = arith.constant 0 : index
    %c0_62 = arith.constant 0 : index
    %99 = vector.load %arg10[%c0_61, %c0_62] : memref<64x128xf32, #tpu.memory_space<vmem>>, vector<64x128xf32>
    %c1_63 = arith.constant 1 : index
    %c0_64 = arith.constant 0 : index
    %c0_65 = arith.constant 0 : index
    %100 = vector.load %arg2[%c1_63, %c0_64, %c0_65] : memref<4x128x128xf32, #tpu.memory_space<vmem>>, vector<1x128x128xf32>
    %101 = vector.shape_cast %100 : vector<1x128x128xf32> to vector<128x128xf32>
    %cst_66 = arith.constant dense<0.000000e+00> : vector<64x128xf32>
    %102 = tpu.matmul %99, %101, %cst_66 {dimension_numbers = #tpu.dot_dimension_numbers<[1], [0], [0], [1], [0, 0, 1, 1], [], []>} : vector<64x128xf32>, vector<128x128xf32>, vector<64x128xf32> -> vector<64x128xf32>
    %c0_67 = arith.constant 0 : index
    %c0_68 = arith.constant 0 : index
    %103 = vector.load %arg10[%c0_67, %c0_68] : memref<64x128xf32, #tpu.memory_space<vmem>>, vector<64x128xf32>
    tpu.vector_store %arg10[%c0_67, %c0_68], %102 {strides = array<i32>} : memref<64x128xf32, #tpu.memory_space<vmem>>, vector<64x128xf32>,
    %c0_69 = arith.constant 0 : index
    %c0_70 = arith.constant 0 : index
    %104 = vector.load %arg10[%c0_69, %c0_70] : memref<64x128xf32, #tpu.memory_space<vmem>>, vector<64x128xf32>
    %c2 = arith.constant 2 : index
    %c0_71 = arith.constant 0 : index
    %105 = vector.load %arg3[%c2, %c0_71] : memref<5x128xf32, #tpu.memory_space<vmem>>, vector<1x128xf32>
    %106 = vector.broadcast %105 : vector<1x128xf32> to vector<64x128xf32>
    %107 = arith.addf %104, %106 : vector<64x128xf32>
    %c0_72 = arith.constant 0 : index
    %c0_73 = arith.constant 0 : index
    %108 = vector.load %arg10[%c0_72, %c0_73] : memref<64x128xf32, #tpu.memory_space<vmem>>, vector<64x128xf32>
    tpu.vector_store %arg10[%c0_72, %c0_73], %107 {strides = array<i32>} : memref<64x128xf32, #tpu.memory_space<vmem>>, vector<64x128xf32>,
    %c0_74 = arith.constant 0 : index
    %c0_75 = arith.constant 0 : index
    %109 = vector.load %arg10[%c0_74, %c0_75] : memref<64x128xf32, #tpu.memory_space<vmem>>, vector<64x128xf32>
    %cst_76 = arith.constant dense<0.000000e+00> : vector<128xf32>
    %110 = vector.multi_reduction <add>, %109, %cst_76 [0] : vector<64x128xf32> to vector<128xf32>
    %111 = vector.shape_cast %110 : vector<128xf32> to vector<1x128xf32>
    %cst_77 = arith.constant 6.400000e+01 : f32
    %112 = vector.broadcast %cst_77 : f32 to vector<1x128xf32>
    %113 = arith.divf %111, %112 : vector<1x128xf32>
    %114 = vector.broadcast %113 : vector<1x128xf32> to vector<64x128xf32>
    %115 = arith.subf %109, %114 : vector<64x128xf32>
    %116 = arith.mulf %115, %115 : vector<64x128xf32>
    %cst_78 = arith.constant dense<0.000000e+00> : vector<128xf32>
    %117 = vector.multi_reduction <add>, %116, %cst_78 [0] : vector<64x128xf32> to vector<128xf32>
    %118 = vector.shape_cast %117 : vector<128xf32> to vector<1x128xf32>
    %cst_79 = arith.constant 6.400000e+01 : f32
    %119 = vector.broadcast %cst_79 : f32 to vector<1x128xf32>
    %120 = arith.divf %118, %119 : vector<1x128xf32>
    %c2_80 = arith.constant 2 : index
    %c0_81 = arith.constant 0 : index
    %121 = vector.load %arg4[%c2_80, %c0_81] : memref<5x128xf32, #tpu.memory_space<vmem>>, vector<1x128xf32>
    %cst_82 = arith.constant 9.99999974E-6 : f32
    %122 = vector.broadcast %cst_82 : f32 to vector<1x128xf32>
    %123 = arith.addf %120, %122 : vector<1x128xf32>
    %124 = math.rsqrt %123 : vector<1x128xf32>
    %125 = arith.mulf %121, %124 : vector<1x128xf32>
    %c0_83 = arith.constant 0 : index
    %c0_84 = arith.constant 0 : index
    %126 = vector.load %arg10[%c0_83, %c0_84] : memref<64x128xf32, #tpu.memory_space<vmem>>, vector<64x128xf32>
    %127 = vector.broadcast %113 : vector<1x128xf32> to vector<64x128xf32>
    %128 = arith.subf %126, %127 : vector<64x128xf32>
    %129 = vector.broadcast %125 : vector<1x128xf32> to vector<64x128xf32>
    %130 = arith.mulf %128, %129 : vector<64x128xf32>
    %c2_85 = arith.constant 2 : index
    %c0_86 = arith.constant 0 : index
    %131 = vector.load %arg5[%c2_85, %c0_86] : memref<5x128xf32, #tpu.memory_space<vmem>>, vector<1x128xf32>
    %132 = vector.broadcast %131 : vector<1x128xf32> to vector<64x128xf32>
    %133 = arith.addf %130, %132 : vector<64x128xf32>
    %cst_87 = arith.constant 0.000000e+00 : f32
    %cst_88 = arith.constant 6.000000e+00 : f32
    %134 = vector.broadcast %cst_87 : f32 to vector<64x128xf32>
    %135 = arith.maximumf %134, %133 : vector<64x128xf32>
    %136 = vector.broadcast %cst_88 : f32 to vector<64x128xf32>
    %137 = arith.minimumf %136, %135 : vector<64x128xf32>
    %c0_89 = arith.constant 0 : index
    %c0_90 = arith.constant 0 : index
    %138 = vector.load %arg10[%c0_89, %c0_90] : memref<64x128xf32, #tpu.memory_space<vmem>>, vector<64x128xf32>
    tpu.vector_store %arg10[%c0_89, %c0_90], %137 {strides = array<i32>} : memref<64x128xf32, #tpu.memory_space<vmem>>, vector<64x128xf32>,
    %c0_91 = arith.constant 0 : index
    %c0_92 = arith.constant 0 : index
    %139 = vector.load %arg10[%c0_91, %c0_92] : memref<64x128xf32, #tpu.memory_space<vmem>>, vector<64x128xf32>
    %c2_93 = arith.constant 2 : index
    %c0_94 = arith.constant 0 : index
    %c0_95 = arith.constant 0 : index
    %140 = vector.load %arg2[%c2_93, %c0_94, %c0_95] : memref<4x128x128xf32, #tpu.memory_space<vmem>>, vector<1x128x128xf32>
    %141 = vector.shape_cast %140 : vector<1x128x128xf32> to vector<128x128xf32>
    %cst_96 = arith.constant dense<0.000000e+00> : vector<64x128xf32>
    %142 = tpu.matmul %139, %141, %cst_96 {dimension_numbers = #tpu.dot_dimension_numbers<[1], [0], [0], [1], [0, 0, 1, 1], [], []>} : vector<64x128xf32>, vector<128x128xf32>, vector<64x128xf32> -> vector<64x128xf32>
    %c0_97 = arith.constant 0 : index
    %c0_98 = arith.constant 0 : index
    %143 = vector.load %arg10[%c0_97, %c0_98] : memref<64x128xf32, #tpu.memory_space<vmem>>, vector<64x128xf32>
    tpu.vector_store %arg10[%c0_97, %c0_98], %142 {strides = array<i32>} : memref<64x128xf32, #tpu.memory_space<vmem>>, vector<64x128xf32>,
    %c0_99 = arith.constant 0 : index
    %c0_100 = arith.constant 0 : index
    %144 = vector.load %arg10[%c0_99, %c0_100] : memref<64x128xf32, #tpu.memory_space<vmem>>, vector<64x128xf32>
    %c3 = arith.constant 3 : index
    %c0_101 = arith.constant 0 : index
    %145 = vector.load %arg3[%c3, %c0_101] : memref<5x128xf32, #tpu.memory_space<vmem>>, vector<1x128xf32>
    %146 = vector.broadcast %145 : vector<1x128xf32> to vector<64x128xf32>
    %147 = arith.addf %144, %146 : vector<64x128xf32>
    %c0_102 = arith.constant 0 : index
    %c0_103 = arith.constant 0 : index
    %148 = vector.load %arg10[%c0_102, %c0_103] : memref<64x128xf32, #tpu.memory_space<vmem>>, vector<64x128xf32>
    tpu.vector_store %arg10[%c0_102, %c0_103], %147 {strides = array<i32>} : memref<64x128xf32, #tpu.memory_space<vmem>>, vector<64x128xf32>,
    %c0_104 = arith.constant 0 : index
    %c0_105 = arith.constant 0 : index
    %149 = vector.load %arg10[%c0_104, %c0_105] : memref<64x128xf32, #tpu.memory_space<vmem>>, vector<64x128xf32>
    %cst_106 = arith.constant dense<0.000000e+00> : vector<128xf32>
    %150 = vector.multi_reduction <add>, %149, %cst_106 [0] : vector<64x128xf32> to vector<128xf32>
    %151 = vector.shape_cast %150 : vector<128xf32> to vector<1x128xf32>
    %cst_107 = arith.constant 6.400000e+01 : f32
    %152 = vector.broadcast %cst_107 : f32 to vector<1x128xf32>
    %153 = arith.divf %151, %152 : vector<1x128xf32>
    %154 = vector.broadcast %153 : vector<1x128xf32> to vector<64x128xf32>
    %155 = arith.subf %149, %154 : vector<64x128xf32>
    %156 = arith.mulf %155, %155 : vector<64x128xf32>
    %cst_108 = arith.constant dense<0.000000e+00> : vector<128xf32>
    %157 = vector.multi_reduction <add>, %156, %cst_108 [0] : vector<64x128xf32> to vector<128xf32>
    %158 = vector.shape_cast %157 : vector<128xf32> to vector<1x128xf32>
    %cst_109 = arith.constant 6.400000e+01 : f32
    %159 = vector.broadcast %cst_109 : f32 to vector<1x128xf32>
    %160 = arith.divf %158, %159 : vector<1x128xf32>
    %c3_110 = arith.constant 3 : index
    %c0_111 = arith.constant 0 : index
    %161 = vector.load %arg4[%c3_110, %c0_111] : memref<5x128xf32, #tpu.memory_space<vmem>>, vector<1x128xf32>
    %cst_112 = arith.constant 9.99999974E-6 : f32
    %162 = vector.broadcast %cst_112 : f32 to vector<1x128xf32>
    %163 = arith.addf %160, %162 : vector<1x128xf32>
    %164 = math.rsqrt %163 : vector<1x128xf32>
    %165 = arith.mulf %161, %164 : vector<1x128xf32>
    %c0_113 = arith.constant 0 : index
    %c0_114 = arith.constant 0 : index
    %166 = vector.load %arg10[%c0_113, %c0_114] : memref<64x128xf32, #tpu.memory_space<vmem>>, vector<64x128xf32>
    %167 = vector.broadcast %153 : vector<1x128xf32> to vector<64x128xf32>
    %168 = arith.subf %166, %167 : vector<64x128xf32>
    %169 = vector.broadcast %165 : vector<1x128xf32> to vector<64x128xf32>
    %170 = arith.mulf %168, %169 : vector<64x128xf32>
    %c3_115 = arith.constant 3 : index
    %c0_116 = arith.constant 0 : index
    %171 = vector.load %arg5[%c3_115, %c0_116] : memref<5x128xf32, #tpu.memory_space<vmem>>, vector<1x128xf32>
    %172 = vector.broadcast %171 : vector<1x128xf32> to vector<64x128xf32>
    %173 = arith.addf %170, %172 : vector<64x128xf32>
    %cst_117 = arith.constant 0.000000e+00 : f32
    %cst_118 = arith.constant 6.000000e+00 : f32
    %174 = vector.broadcast %cst_117 : f32 to vector<64x128xf32>
    %175 = arith.maximumf %174, %173 : vector<64x128xf32>
    %176 = vector.broadcast %cst_118 : f32 to vector<64x128xf32>
    %177 = arith.minimumf %176, %175 : vector<64x128xf32>
    %c0_119 = arith.constant 0 : index
    %c0_120 = arith.constant 0 : index
    %178 = vector.load %arg10[%c0_119, %c0_120] : memref<64x128xf32, #tpu.memory_space<vmem>>, vector<64x128xf32>
    tpu.vector_store %arg10[%c0_119, %c0_120], %177 {strides = array<i32>} : memref<64x128xf32, #tpu.memory_space<vmem>>, vector<64x128xf32>,
    %c0_121 = arith.constant 0 : index
    %c0_122 = arith.constant 0 : index
    %179 = vector.load %arg10[%c0_121, %c0_122] : memref<64x128xf32, #tpu.memory_space<vmem>>, vector<64x128xf32>
    %c3_123 = arith.constant 3 : index
    %c0_124 = arith.constant 0 : index
    %c0_125 = arith.constant 0 : index
    %180 = vector.load %arg2[%c3_123, %c0_124, %c0_125] : memref<4x128x128xf32, #tpu.memory_space<vmem>>, vector<1x128x128xf32>
    %181 = vector.shape_cast %180 : vector<1x128x128xf32> to vector<128x128xf32>
    %cst_126 = arith.constant dense<0.000000e+00> : vector<64x128xf32>
    %182 = tpu.matmul %179, %181, %cst_126 {dimension_numbers = #tpu.dot_dimension_numbers<[1], [0], [0], [1], [0, 0, 1, 1], [], []>} : vector<64x128xf32>, vector<128x128xf32>, vector<64x128xf32> -> vector<64x128xf32>
    %c0_127 = arith.constant 0 : index
    %c0_128 = arith.constant 0 : index
    %183 = vector.load %arg10[%c0_127, %c0_128] : memref<64x128xf32, #tpu.memory_space<vmem>>, vector<64x128xf32>
    tpu.vector_store %arg10[%c0_127, %c0_128], %182 {strides = array<i32>} : memref<64x128xf32, #tpu.memory_space<vmem>>, vector<64x128xf32>,
    %c0_129 = arith.constant 0 : index
    %c0_130 = arith.constant 0 : index
    %184 = vector.load %arg10[%c0_129, %c0_130] : memref<64x128xf32, #tpu.memory_space<vmem>>, vector<64x128xf32>
    %c4 = arith.constant 4 : index
    %c0_131 = arith.constant 0 : index
    %185 = vector.load %arg3[%c4, %c0_131] : memref<5x128xf32, #tpu.memory_space<vmem>>, vector<1x128xf32>
    %186 = vector.broadcast %185 : vector<1x128xf32> to vector<64x128xf32>
    %187 = arith.addf %184, %186 : vector<64x128xf32>
    %c0_132 = arith.constant 0 : index
    %c0_133 = arith.constant 0 : index
    %188 = vector.load %arg10[%c0_132, %c0_133] : memref<64x128xf32, #tpu.memory_space<vmem>>, vector<64x128xf32>
    tpu.vector_store %arg10[%c0_132, %c0_133], %187 {strides = array<i32>} : memref<64x128xf32, #tpu.memory_space<vmem>>, vector<64x128xf32>,
    %c0_134 = arith.constant 0 : index
    %c0_135 = arith.constant 0 : index
    %189 = vector.load %arg10[%c0_134, %c0_135] : memref<64x128xf32, #tpu.memory_space<vmem>>, vector<64x128xf32>
    %cst_136 = arith.constant dense<0.000000e+00> : vector<128xf32>
    %190 = vector.multi_reduction <add>, %189, %cst_136 [0] : vector<64x128xf32> to vector<128xf32>
    %191 = vector.shape_cast %190 : vector<128xf32> to vector<1x128xf32>
    %cst_137 = arith.constant 6.400000e+01 : f32
    %192 = vector.broadcast %cst_137 : f32 to vector<1x128xf32>
    %193 = arith.divf %191, %192 : vector<1x128xf32>
    %194 = vector.broadcast %193 : vector<1x128xf32> to vector<64x128xf32>
    %195 = arith.subf %189, %194 : vector<64x128xf32>
    %196 = arith.mulf %195, %195 : vector<64x128xf32>
    %cst_138 = arith.constant dense<0.000000e+00> : vector<128xf32>
    %197 = vector.multi_reduction <add>, %196, %cst_138 [0] : vector<64x128xf32> to vector<128xf32>
    %198 = vector.shape_cast %197 : vector<128xf32> to vector<1x128xf32>
    %cst_139 = arith.constant 6.400000e+01 : f32
    %199 = vector.broadcast %cst_139 : f32 to vector<1x128xf32>
    %200 = arith.divf %198, %199 : vector<1x128xf32>
    %c4_140 = arith.constant 4 : index
    %c0_141 = arith.constant 0 : index
    %201 = vector.load %arg4[%c4_140, %c0_141] : memref<5x128xf32, #tpu.memory_space<vmem>>, vector<1x128xf32>
    %cst_142 = arith.constant 9.99999974E-6 : f32
    %202 = vector.broadcast %cst_142 : f32 to vector<1x128xf32>
    %203 = arith.addf %200, %202 : vector<1x128xf32>
    %204 = math.rsqrt %203 : vector<1x128xf32>
    %205 = arith.mulf %201, %204 : vector<1x128xf32>
    %c0_143 = arith.constant 0 : index
    %c0_144 = arith.constant 0 : index
    %206 = vector.load %arg10[%c0_143, %c0_144] : memref<64x128xf32, #tpu.memory_space<vmem>>, vector<64x128xf32>
    %207 = vector.broadcast %193 : vector<1x128xf32> to vector<64x128xf32>
    %208 = arith.subf %206, %207 : vector<64x128xf32>
    %209 = vector.broadcast %205 : vector<1x128xf32> to vector<64x128xf32>
    %210 = arith.mulf %208, %209 : vector<64x128xf32>
    %c4_145 = arith.constant 4 : index
    %c0_146 = arith.constant 0 : index
    %211 = vector.load %arg5[%c4_145, %c0_146] : memref<5x128xf32, #tpu.memory_space<vmem>>, vector<1x128xf32>
    %212 = vector.broadcast %211 : vector<1x128xf32> to vector<64x128xf32>
    %213 = arith.addf %210, %212 : vector<64x128xf32>
    %cst_147 = arith.constant 0.000000e+00 : f32
    %cst_148 = arith.constant 6.000000e+00 : f32
    %214 = vector.broadcast %cst_147 : f32 to vector<64x128xf32>
    %215 = arith.maximumf %214, %213 : vector<64x128xf32>
    %216 = vector.broadcast %cst_148 : f32 to vector<64x128xf32>
    %217 = arith.minimumf %216, %215 : vector<64x128xf32>
    %c0_149 = arith.constant 0 : index
    %c0_150 = arith.constant 0 : index
    %218 = vector.load %arg10[%c0_149, %c0_150] : memref<64x128xf32, #tpu.memory_space<vmem>>, vector<64x128xf32>
    tpu.vector_store %arg10[%c0_149, %c0_150], %217 {strides = array<i32>} : memref<64x128xf32, #tpu.memory_space<vmem>>, vector<64x128xf32>,
    %c0_151 = arith.constant 0 : index
    %c0_152 = arith.constant 0 : index
    %219 = vector.load %arg6[%c0_151, %c0_152] : memref<1x128xf32, #tpu.memory_space<vmem>>, vector<1x128xf32>
    %c0_153 = arith.constant 0 : index
    %c0_154 = arith.constant 0 : index
    %220 = vector.load %arg10[%c0_153, %c0_154] : memref<64x128xf32, #tpu.memory_space<vmem>>, vector<64x128xf32>
    %cst_155 = arith.constant dense<0.000000e+00> : vector<1x64xf32>
    %221 = tpu.matmul %219, %220, %cst_155 {dimension_numbers = #tpu.dot_dimension_numbers<[1], [1], [0], [0], [0, 0, 1, 0], [], []>} : vector<1x128xf32>, vector<64x128xf32>, vector<1x64xf32> -> vector<1x64xf32>
    %c0_156 = arith.constant 0 : index
    %222 = memref.load %arg7[%c0_156] : memref<1xf32, #tpu.memory_space<smem>>
    %223 = vector.broadcast %222 : f32 to vector<1x64xf32>
    %224 = arith.addf %221, %223 : vector<1x64xf32>
    %cst_157 = arith.constant 0.000000e+00 : f32
    %225 = vector.broadcast %cst_157 : f32 to vector<1x64xf32>
    %226 = arith.subf %225, %224 : vector<1x64xf32>
    %227 = math.exp %226 : vector<1x64xf32>
    %cst_158 = arith.constant 1.000000e+00 : f32
    %228 = vector.broadcast %cst_158 : f32 to vector<1x64xf32>
    %229 = arith.addf %228, %227 : vector<1x64xf32>
    %230 = tpu.reciprocal %229 {approx = true} : vector<1x64xf32> -> vector<1x64xf32>
    %cst_159 = arith.constant 0.00999999977 : f32
    %231 = vector.broadcast %cst_159 : f32 to vector<1x64xf32>
    %232 = arith.addf %231, %230 : vector<1x64xf32>
    %c0_160 = arith.constant 0 : index
    %c0_161 = arith.constant 0 : index
    %233 = vector.load %arg8[%c0_160, %c0_161] : memref<1x64xf32, #tpu.memory_space<vmem>>, vector<1x64xf32>
    %cst_162 = arith.constant 1.000000e+00 : f32
    %234 = vector.broadcast %cst_162 : f32 to vector<1x64xf32>
    %235 = arith.subf %234, %233 : vector<1x64xf32>
    %236 = arith.mulf %235, %232 : vector<1x64xf32>
    %cst_163 = arith.constant 1.000000e+00 : f32
    %237 = vector.broadcast %cst_163 : f32 to vector<1x64xf32>
    %238 = arith.subf %237, %232 : vector<1x64xf32>
    %239 = math.absf %238 : vector<1x64xf32>
    %240 = arith.addf %232, %239 : vector<1x64xf32>
    %241 = arith.mulf %233, %240 : vector<1x64xf32>
    %242 = arith.addf %236, %241 : vector<1x64xf32>
    %c0_164 = arith.constant 0 : index
    %c0_165 = arith.constant 0 : index
    %243 = vector.load %arg9[%c0_164, %c0_165] : memref<1x64xf32, #tpu.memory_space<vmem>>, vector<1x64xf32>
    tpu.vector_store %arg9[%c0_164, %c0_165], %242 {strides = array<i32>} : memref<1x64xf32, #tpu.memory_space<vmem>>, vector<1x64xf32>,
    return
  }
}

</mosaic_0001>

<llo_original>
// kernel: tpu_custom_call.1
$region0: #{tpu_custom_call.1}
  #allocation0 [shape = 'u32[]', space=smem, size = 0x4, offset = 0x4, fixed_abs, tag = 'smem constant byte address 0x4 - core index']
  #allocation1 [shape = 'u32[144,128]{1,0:T(1,128)}', space=vmem, size = 0x12000, scoped, tag = 'internal scratch']
  #allocation2 [shape = 'f32[64,128]{1,0:T(8,128)}', space=vmem, size = 0x8000, scoped, tag = 'scratch operand']
  #allocation3 [shape = 'f32[1]{0:T(128)S(6)}', space=smem, size = 0x200, scoped, tag = 'scoped memory for tpu_custom_call.1']
  %s0 = inlined_call_operand.vmem [shape: f32[64,2], index: 0, kind: input, shape index: {}]
  %s1 = inlined_call_operand.vmem [shape: f32[2,128], index: 1, kind: input, shape index: {}]
  %s2 = inlined_call_operand.hbm [shape: f32[4,128,128], index: 2, kind: input, shape index: {}]
  %s3 = inlined_call_operand.vmem [shape: f32[5,128], index: 3, kind: input, shape index: {}]
  %s4 = inlined_call_operand.vmem [shape: f32[5,128], index: 4, kind: input, shape index: {}]
  %s5 = inlined_call_operand.vmem [shape: f32[5,128], index: 5, kind: input, shape index: {}]
  %s6 = inlined_call_operand.vmem [shape: f32[1,128], index: 6, kind: input, shape index: {}]
  %s7 = inlined_call_operand.<no memory space> [shape: f32[1], index: 7, kind: input, shape index: {}]
  %s8 = inlined_call_operand.vmem [shape: f32[1,64], index: 8, kind: input, shape index: {}]
  %s9 = inlined_call_operand.hbm [shape: f32[1,64], index: 9, kind: output, shape index: {}]
  %s10 = sld [smem:[#allocation0]]
  $region50: #{tpu_custom_call.1} parent=0
    _
  %s12 = ssub.s32 1, %s10
  %s13 = scalar_select 0, %s12, %s10
  %14 = sst [smem:[#allocation3]] %s7
  $region1: #{tpu_custom_call.1} parent=0
    #allocation4 [shape = 'u8[262144]{0}', space=vmem, size = 0x40000, scoped, tag = 'input window, operand 2, single buffered']
    #allocation5 [shape = 's32[1]{0}', space=sflag, size = 0x4, scoped, tag = 'scoped memory for tpu_custom_call.1']
    #allocation6 [shape = 's32[1]{0}', space=sflag, size = 0x4, scoped, tag = 'scoped memory for tpu_custom_call.1']
    #allocation7 [shape = 'u8[512]{0}', space=vmem, size = 0x400, scoped, tag = 'output window, operand 0, single buffered']
    %15 = vsyncpa [#allocation5], 0
    %16 = vsyncpa [#allocation6], 0
    // Predicated region
    $region2: #{tpu_custom_call.1} parent=1 // pred_check
      _
    $region3: #{tpu_custom_call.1} parent=1 // pred_check_branch
      %18 = sbr.rel (0) target = $region5
    $region4: #{tpu_custom_call.1} parent=1 // pred_region
      _
    $region5: #{tpu_custom_call.1} parent=1 // pred_fallthru
      _
    // Predicated region
    $region6: #{tpu_custom_call.1} parent=1 // pred_check
      _
    $region7: #{tpu_custom_call.1} parent=1 // pred_check_branch
      %20 = sbr.rel (0) target = $region9
    $region8: #{tpu_custom_call.1} parent=1 // pred_region
      _
    $region9: #{tpu_custom_call.1} parent=1 // pred_fallthru
      _
    // Predicated region
    $region10: #{tpu_custom_call.1} parent=1 // pred_check
      _
    $region11: #{tpu_custom_call.1} parent=1 // pred_check_branch
      %22 = sbr.rel (0) target = $region13
    $region12: #{tpu_custom_call.1} parent=1 // pred_region
      %s24 = ssub.s32 8192, 8192
      %25 = vsyncadd [#allocation5], %s24
      %s26 = sshll.u32 [#allocation4], 4
      %s27 = int_to_ptr.vmem [resolvable:$true] %s26
      %32 = dma.hbm_to_vmem [thread:$0]  %s2, 8192, %s27, [#allocation5], 128, 128, 8
    $region13: #{tpu_custom_call.1} parent=1 // pred_fallthru
      _
    // Predicated region
    $region14: #{tpu_custom_call.1} parent=1 // pred_check
      _
    $region15: #{tpu_custom_call.1} parent=1 // pred_check_branch
      %34 = sbr.rel (0) target = $region17
    $region16: #{tpu_custom_call.1} parent=1 // pred_region
      _
    $region17: #{tpu_custom_call.1} parent=1 // pred_fallthru
      _
    // Predicated region
    $region18: #{tpu_custom_call.1} parent=1 // pred_check
      _
    $region19: #{tpu_custom_call.1} parent=1 // pred_check_branch
      %36 = sbr.rel (0) target = $region21
    $region20: #{tpu_custom_call.1} parent=1 // pred_region
      _
    $region21: #{tpu_custom_call.1} parent=1 // pred_fallthru
      _
    // Predicated region
    $region22: #{tpu_custom_call.1} parent=1 // pred_check
      _
    $region23: #{tpu_custom_call.1} parent=1 // pred_check_branch
      %38 = sbr.rel (0) target = $region25
    $region24: #{tpu_custom_call.1} parent=1 // pred_region
      _
    $region25: #{tpu_custom_call.1} parent=1 // pred_fallthru
      _
    // Predicated region
    $region26: #{tpu_custom_call.1} parent=1 // pred_check
      _
    $region27: #{tpu_custom_call.1} parent=1 // pred_check_branch
      %40 = sbr.rel (0) target = $region29
    $region28: #{tpu_custom_call.1} parent=1 // pred_region
      _
    $region29: #{tpu_custom_call.1} parent=1 // pred_fallthru
      _
    // Predicated region
    $region30: #{tpu_custom_call.1} parent=1 // pred_check
      _
    $region31: #{tpu_custom_call.1} parent=1 // pred_check_branch
      %42 = sbr.rel (0) target = $region33
    $region32: #{tpu_custom_call.1} parent=1 // pred_region
      _
    $region33: #{tpu_custom_call.1} parent=1 // pred_fallthru
      _
    // Predicated region
    $region34: #{tpu_custom_call.1} parent=1 // pred_check
      _
    $region35: #{tpu_custom_call.1} parent=1 // pred_check_branch
      %44 = sbr.rel (0) target = $region37
    $region36: #{tpu_custom_call.1} parent=1 // pred_region
      _
    $region37: #{tpu_custom_call.1} parent=1 // pred_fallthru
      _
    // Predicated region
    $region38: #{tpu_custom_call.1} parent=1 // pred_check
      _
    $region39: #{tpu_custom_call.1} parent=1 // pred_check_branch
      %46 = sbr.rel (0) target = $region41
    $region40: #{tpu_custom_call.1} parent=1 // pred_region
      %47 = dma.done [#allocation5], 8192
    $region41: #{tpu_custom_call.1} parent=1 // pred_fallthru
      _
    %v48 = vld [vmem:[%s0] sm:$0xff]
    %v49 = vld [vmem:[%s0 + $0x8] sm:$0xff]
    %v50 = vld [vmem:[%s0 + $0x10] sm:$0xff]
    %v51 = vld [vmem:[%s0 + $0x18] sm:$0xff]
    %v52 = vld [vmem:[%s0 + $0x20] sm:$0xff]
    %v53 = vld [vmem:[%s0 + $0x28] sm:$0xff]
    %v54 = vld [vmem:[%s0 + $0x30] sm:$0xff]
    %v55 = vld [vmem:[%s0 + $0x38] sm:$0xff]
    %v56 = vsub.f32 %v48, 8.0
    %v57 = vsub.f32 %v49, 8.0
    %v58 = vsub.f32 %v50, 8.0
    %v59 = vsub.f32 %v51, 8.0
    %v60 = vsub.f32 %v52, 8.0
    %v61 = vsub.f32 %v53, 8.0
    %v62 = vsub.f32 %v54, 8.0
    %v63 = vsub.f32 %v55, 8.0
    %v64 = vand.u32 2147483647, %v56
    %v65 = vand.u32 2147483647, %v57
    %v66 = vand.u32 2147483647, %v58
    %v67 = vand.u32 2147483647, %v59
    %v68 = vand.u32 2147483647, %v60
    %v69 = vand.u32 2147483647, %v61
    %v70 = vand.u32 2147483647, %v62
    %v71 = vand.u32 2147483647, %v63
    %v72 = vadd.f32 %v64, 8.0
    %v73 = vadd.f32 %v65, 8.0
    %v74 = vadd.f32 %v66, 8.0
    %v75 = vadd.f32 %v67, 8.0
    %v76 = vadd.f32 %v68, 8.0
    %v77 = vadd.f32 %v69, 8.0
    %v78 = vadd.f32 %v70, 8.0
    %v79 = vadd.f32 %v71, 8.0
    %v80 = vld [vmem:[%s1] sm:$0x3]
    %82 = vset.pattern.permute.xlu0 0
    %83 = vperm.xlu0 %82, %v72
    %v84 = vpop.permute.xlu0 %83
    %87 = vset.pattern.permute.xlu0 0
    %88 = vperm.xlu0 %87, %v73
    %v89 = vpop.permute.xlu0 %88
    %92 = vset.pattern.permute.xlu0 0
    %93 = vperm.xlu0 %92, %v74
    %v94 = vpop.permute.xlu0 %93
    %97 = vset.pattern.permute.xlu0 0
    %98 = vperm.xlu0 %97, %v75
    %v99 = vpop.permute.xlu0 %98
    %102 = vset.pattern.permute.xlu0 0
    %103 = vperm.xlu0 %102, %v76
    %v104 = vpop.permute.xlu0 %103
    %107 = vset.pattern.permute.xlu0 0
    %108 = vperm.xlu0 %107, %v77
    %v109 = vpop.permute.xlu0 %108
    %112 = vset.pattern.permute.xlu0 0
    %113 = vperm.xlu0 %112, %v78
    %v114 = vpop.permute.xlu0 %113
    %117 = vset.pattern.permute.xlu0 0
    %118 = vperm.xlu0 %117, %v79
    %v119 = vpop.permute.xlu0 %118
    %v121 = vlaneseq
    %v122 = vshrl.u32 %v121, 7
    %v123 = vsub.s32 0, %v122
    %v124 = vrot.slane %v80, %v123
    %v125 = vmul.f32 %v84, %v124
    %v126 = vmul.f32 %v89, %v124
    %v127 = vmul.f32 %v94, %v124
    %v128 = vmul.f32 %v99, %v124
    %v129 = vmul.f32 %v104, %v124
    %v130 = vmul.f32 %v109, %v124
    %v131 = vmul.f32 %v114, %v124
    %v132 = vmul.f32 %v119, %v124
    %133 = vset.pattern.permute.xlu0 1
    %134 = vperm.xlu0 %133, %v72
    %v135 = vpop.permute.xlu0 %134
    %137 = vset.pattern.permute.xlu0 1
    %138 = vperm.xlu0 %137, %v73
    %v139 = vpop.permute.xlu0 %138
    %141 = vset.pattern.permute.xlu0 1
    %142 = vperm.xlu0 %141, %v74
    %v143 = vpop.permute.xlu0 %142
    %145 = vset.pattern.permute.xlu0 1
    %146 = vperm.xlu0 %145, %v75
    %v147 = vpop.permute.xlu0 %146
    %149 = vset.pattern.permute.xlu0 1
    %150 = vperm.xlu0 %149, %v76
    %v151 = vpop.permute.xlu0 %150
    %153 = vset.pattern.permute.xlu0 1
    %154 = vperm.xlu0 %153, %v77
    %v155 = vpop.permute.xlu0 %154
    %157 = vset.pattern.permute.xlu0 1
    %158 = vperm.xlu0 %157, %v78
    %v159 = vpop.permute.xlu0 %158
    %161 = vset.pattern.permute.xlu0 1
    %162 = vperm.xlu0 %161, %v79
    %v163 = vpop.permute.xlu0 %162
    %v165 = vlaneseq
    %v166 = vshrl.u32 %v165, 7
    %v167 = vsub.s32 1, %v166
    %v168 = vrot.slane %v80, %v167
    %v169 = vmul.f32 %v135, %v168
    %v170 = vmul.f32 %v139, %v168
    %v171 = vmul.f32 %v143, %v168
    %v172 = vmul.f32 %v147, %v168
    %v173 = vmul.f32 %v151, %v168
    %v174 = vmul.f32 %v155, %v168
    %v175 = vmul.f32 %v159, %v168
    %v176 = vmul.f32 %v163, %v168
    %v177 = vadd.f32 %v125, %v169
    %v178 = vadd.f32 %v126, %v170
    %v179 = vadd.f32 %v127, %v171
    %v180 = vadd.f32 %v128, %v172
    %v181 = vadd.f32 %v129, %v173
    %v182 = vadd.f32 %v130, %v174
    %v183 = vadd.f32 %v131, %v175
    %v184 = vadd.f32 %v132, %v176
    %185 = vst [vmem:[#allocation2] sm:$0xff] %v177
    %186 = vst [vmem:[#allocation2 + $0x8] sm:$0xff] %v178
    %187 = vst [vmem:[#allocation2 + $0x10] sm:$0xff] %v179
    %188 = vst [vmem:[#allocation2 + $0x18] sm:$0xff] %v180
    %189 = vst [vmem:[#allocation2 + $0x20] sm:$0xff] %v181
    %190 = vst [vmem:[#allocation2 + $0x28] sm:$0xff] %v182
    %191 = vst [vmem:[#allocation2 + $0x30] sm:$0xff] %v183
    %192 = vst [vmem:[#allocation2 + $0x38] sm:$0xff] %v184
    %v193 = vld [vmem:[#allocation2] sm:$0xff]
    %v194 = vld [vmem:[#allocation2 + $0x8] sm:$0xff]
    %v195 = vld [vmem:[#allocation2 + $0x10] sm:$0xff]
    %v196 = vld [vmem:[#allocation2 + $0x18] sm:$0xff]
    %v197 = vld [vmem:[#allocation2 + $0x20] sm:$0xff]
    %v198 = vld [vmem:[#allocation2 + $0x28] sm:$0xff]
    %v199 = vld [vmem:[#allocation2 + $0x30] sm:$0xff]
    %v200 = vld [vmem:[#allocation2 + $0x38] sm:$0xff]
    %v201 = vld [vmem:[%s3] sm:$0x1]
    %v202 = vlaneseq
    %v203 = vshrl.u32 %v202, 7
    %v204 = vsub.s32 0, %v203
    %v205 = vrot.slane %v201, %v204
    %v206 = vadd.f32 %v193, %v205
    %v207 = vadd.f32 %v194, %v205
    %v208 = vadd.f32 %v195, %v205
    %v209 = vadd.f32 %v196, %v205
    %v210 = vadd.f32 %v197, %v205
    %v211 = vadd.f32 %v198, %v205
    %v212 = vadd.f32 %v199, %v205
    %v213 = vadd.f32 %v200, %v205
    %214 = vst [vmem:[#allocation2] sm:$0xff] %v206
    %215 = vst [vmem:[#allocation2 + $0x8] sm:$0xff] %v207
    %216 = vst [vmem:[#allocation2 + $0x10] sm:$0xff] %v208
    %217 = vst [vmem:[#allocation2 + $0x18] sm:$0xff] %v209
    %218 = vst [vmem:[#allocation2 + $0x20] sm:$0xff] %v210
    %219 = vst [vmem:[#allocation2 + $0x28] sm:$0xff] %v211
    %220 = vst [vmem:[#allocation2 + $0x30] sm:$0xff] %v212
    %221 = vst [vmem:[#allocation2 + $0x38] sm:$0xff] %v213
    %v222 = vld [vmem:[#allocation2] sm:$0xff]
    %v223 = vld [vmem:[#allocation2 + $0x8] sm:$0xff]
    %v224 = vld [vmem:[#allocation2 + $0x10] sm:$0xff]
    %v225 = vld [vmem:[#allocation2 + $0x18] sm:$0xff]
    %v226 = vld [vmem:[#allocation2 + $0x20] sm:$0xff]
    %v227 = vld [vmem:[#allocation2 + $0x28] sm:$0xff]
    %v228 = vld [vmem:[#allocation2 + $0x30] sm:$0xff]
    %v229 = vld [vmem:[#allocation2 + $0x38] sm:$0xff]
    %v230 = vadd.f32 %v222, %v223
    %v231 = vadd.f32 %v230, %v224
    %v232 = vadd.f32 %v231, %v225
    %v233 = vadd.f32 %v232, %v226
    %v234 = vadd.f32 %v233, %v227
    %v235 = vadd.f32 %v234, %v228
    %v236 = vadd.f32 %v235, %v229
    %v237 = vrot.slane %v236, 4
    %v238 = vadd.f32 %v236, %v237
    %v239 = vrot.slane %v238, 2
    %v240 = vadd.f32 %v238, %v239
    %v241 = vrot.slane %v240, 1
    %v242 = vadd.f32 %v240, %v241
    %v243 = vrcp.pop 64.0
    %v244 = vmul.f32 %v242, %v243
    %v245 = vsub.f32 %v222, %v244
    %v246 = vsub.f32 %v223, %v244
    %v247 = vsub.f32 %v224, %v244
    %v248 = vsub.f32 %v225, %v244
    %v249 = vsub.f32 %v226, %v244
    %v250 = vsub.f32 %v227, %v244
    %v251 = vsub.f32 %v228, %v244
    %v252 = vsub.f32 %v229, %v244
    %v253 = vmul.f32 %v245, %v245
    %v254 = vmul.f32 %v246, %v246
    %v255 = vmul.f32 %v247, %v247
    %v256 = vmul.f32 %v248, %v248
    %v257 = vmul.f32 %v249, %v249
    %v258 = vmul.f32 %v250, %v250
    %v259 = vmul.f32 %v251, %v251
    %v260 = vmul.f32 %v252, %v252
    %v261 = vadd.f32 %v253, %v254
    %v262 = vadd.f32 %v261, %v255
    %v263 = vadd.f32 %v262, %v256
    %v264 = vadd.f32 %v263, %v257
    %v265 = vadd.f32 %v264, %v258
    %v266 = vadd.f32 %v265, %v259
    %v267 = vadd.f32 %v266, %v260
    %v268 = vrot.slane %v267, 4
    %v269 = vadd.f32 %v267, %v268
    %v270 = vrot.slane %v269, 2
    %v271 = vadd.f32 %v269, %v270
    %v272 = vrot.slane %v271, 1
    %v273 = vadd.f32 %v271, %v272
    %v274 = vmul.f32 %v273, %v243
    %v275 = vld [vmem:[%s4] sm:$0x1]
    %v276 = vadd.f32 %v274, 1e-05
    %v277 = vrsqrt.pop %v276
    %v278 = vmul.f32 %v275, %v277
    %v279 = vlaneseq
    %v280 = vshrl.u32 %v279, 7
    %v281 = vsub.s32 0, %v280
    %v282 = vrot.slane %v278, %v281
    %v283 = vmul.f32 %v245, %v282
    %v284 = vmul.f32 %v246, %v282
    %v285 = vmul.f32 %v247, %v282
    %v286 = vmul.f32 %v248, %v282
    %v287 = vmul.f32 %v249, %v282
    %v288 = vmul.f32 %v250, %v282
    %v289 = vmul.f32 %v251, %v282
    %v290 = vmul.f32 %v252, %v282
    %v291 = vld [vmem:[%s5] sm:$0x1]
    %v292 = vlaneseq
    %v293 = vshrl.u32 %v292, 7
    %v294 = vsub.s32 0, %v293
    %v295 = vrot.slane %v291, %v294
    %v296 = vadd.f32 %v283, %v295
    %v297 = vadd.f32 %v284, %v295
    %v298 = vadd.f32 %v285, %v295
    %v299 = vadd.f32 %v286, %v295
    %v300 = vadd.f32 %v287, %v295
    %v301 = vadd.f32 %v288, %v295
    %v302 = vadd.f32 %v289, %v295
    %v303 = vadd.f32 %v290, %v295
    %v304 = vmax.f32 %v296, 0.0
    %v305 = vmax.f32 %v297, 0.0
    %v306 = vmax.f32 %v298, 0.0
    %v307 = vmax.f32 %v299, 0.0
    %v308 = vmax.f32 %v300, 0.0
    %v309 = vmax.f32 %v301, 0.0
    %v310 = vmax.f32 %v302, 0.0
    %v311 = vmax.f32 %v303, 0.0
    %v312 = vmin.f32 %v304, 6.0
    %v313 = vmin.f32 %v305, 6.0
    %v314 = vmin.f32 %v306, 6.0
    %v315 = vmin.f32 %v307, 6.0
    %v316 = vmin.f32 %v308, 6.0
    %v317 = vmin.f32 %v309, 6.0
    %v318 = vmin.f32 %v310, 6.0
    %v319 = vmin.f32 %v311, 6.0
    %320 = vst [vmem:[#allocation2] sm:$0xff] %v312
    %321 = vst [vmem:[#allocation2 + $0x8] sm:$0xff] %v313
    %322 = vst [vmem:[#allocation2 + $0x10] sm:$0xff] %v314
    %323 = vst [vmem:[#allocation2 + $0x18] sm:$0xff] %v315
    %324 = vst [vmem:[#allocation2 + $0x20] sm:$0xff] %v316
    %325 = vst [vmem:[#allocation2 + $0x28] sm:$0xff] %v317
    %326 = vst [vmem:[#allocation2 + $0x30] sm:$0xff] %v318
    %327 = vst [vmem:[#allocation2 + $0x38] sm:$0xff] %v319
    %v328 = vld [vmem:[#allocation2] sm:$0xff]
    %v329 = vld [vmem:[#allocation2 + $0x8] sm:$0xff]
    %v330 = vld [vmem:[#allocation2 + $0x10] sm:$0xff]
    %v331 = vld [vmem:[#allocation2 + $0x18] sm:$0xff]
    %v332 = vld [vmem:[#allocation2 + $0x20] sm:$0xff]
    %v333 = vld [vmem:[#allocation2 + $0x28] sm:$0xff]
    %v334 = vld [vmem:[#allocation2 + $0x30] sm:$0xff]
    %v335 = vld [vmem:[#allocation2 + $0x38] sm:$0xff]
    %v336 = vld [vmem:[#allocation4] sm:$0xff]
    %v337 = vld [vmem:[#allocation4 + $0x8] sm:$0xff]
    %v338 = vld [vmem:[#allocation4 + $0x10] sm:$0xff]
    %v339 = vld [vmem:[#allocation4 + $0x18] sm:$0xff]
    %v340 = vld [vmem:[#allocation4 + $0x20] sm:$0xff]
    %v341 = vld [vmem:[#allocation4 + $0x28] sm:$0xff]
    %v342 = vld [vmem:[#allocation4 + $0x30] sm:$0xff]
    %v343 = vld [vmem:[#allocation4 + $0x38] sm:$0xff]
    %v344 = vld [vmem:[#allocation4 + $0x40] sm:$0xff]
    %v345 = vld [vmem:[#allocation4 + $0x48] sm:$0xff]
    %v346 = vld [vmem:[#allocation4 + $0x50] sm:$0xff]
    %v347 = vld [vmem:[#allocation4 + $0x58] sm:$0xff]
    %v348 = vld [vmem:[#allocation4 + $0x60] sm:$0xff]
    %v349 = vld [vmem:[#allocation4 + $0x68] sm:$0xff]
    %v350 = vld [vmem:[#allocation4 + $0x70] sm:$0xff]
    %v351 = vld [vmem:[#allocation4 + $0x78] sm:$0xff]
    %352 = vmatprep.subr.mxu0 0.0
    %353 = vmatpush1.msra.mxu0 %v351
    %354 = vmatprep.subr.mxu0 0.0
    %355 = vmatpush1.msra.mxu0 %v350
    %356 = vmatprep.subr.mxu0 0.0
    %357 = vmatpush1.msra.mxu0 %v349
    %358 = vmatprep.subr.mxu0 0.0
    %359 = vmatpush1.msra.mxu0 %v348
    %360 = vmatprep.subr.mxu0 0.0
    %361 = vmatpush1.msra.mxu0 %v347
    %362 = vmatprep.subr.mxu0 0.0
    %363 = vmatpush1.msra.mxu0 %v346
    %364 = vmatprep.subr.mxu0 0.0
    %365 = vmatpush1.msra.mxu0 %v345
    %366 = vmatprep.subr.mxu0 0.0
    %367 = vmatpush1.msra.mxu0 %v344
    %368 = vmatprep.subr.mxu0 0.0
    %369 = vmatpush1.msra.mxu0 %v343
    %370 = vmatprep.subr.mxu0 0.0
    %371 = vmatpush1.msra.mxu0 %v342
    %372 = vmatprep.subr.mxu0 0.0
    %373 = vmatpush1.msra.mxu0 %v341
    %374 = vmatprep.subr.mxu0 0.0
    %375 = vmatpush1.msra.mxu0 %v340
    %376 = vmatprep.subr.mxu0 0.0
    %377 = vmatpush1.msra.mxu0 %v339
    %378 = vmatprep.subr.mxu0 0.0
    %379 = vmatpush1.msra.mxu0 %v338
    %380 = vmatprep.subr.mxu0 0.0
    %381 = vmatpush1.msra.mxu0 %v337
    %382 = vmatprep.subr.mxu0 0.0
    %383 = vmatpush1.msra.mxu0 %v336
    %384 = vmatprep.subr.mxu0 0.0
    %385 = vmatpush2.msra.mxu0 0.0
    %386 = vmatprep.subr.mxu0 0.0
    %387 = vmatpush2.msra.mxu0 0.0
    %388 = vmatprep.subr.mxu0 0.0
    %389 = vmatpush2.msra.mxu0 0.0
    %390 = vmatprep.subr.mxu0 0.0
    %391 = vmatpush2.msra.mxu0 0.0
    %392 = vmatprep.subr.mxu0 0.0
    %393 = vmatpush2.msra.mxu0 0.0
    %394 = vmatprep.subr.mxu0 0.0
    %395 = vmatpush2.msra.mxu0 0.0
    %396 = vmatprep.subr.mxu0 0.0
    %397 = vmatpush2.msra.mxu0 0.0
    %398 = vmatprep.subr.mxu0 0.0
    %399 = vmatpush2.msra.mxu0 0.0
    %400 = vmatprep.subr.mxu0 0.0
    %401 = vmatpush2.msra.mxu0 0.0
    %402 = vmatprep.subr.mxu0 0.0
    %403 = vmatpush2.msra.mxu0 0.0
    %404 = vmatprep.subr.mxu0 0.0
    %405 = vmatpush2.msra.mxu0 0.0
    %406 = vmatprep.subr.mxu0 0.0
    %407 = vmatpush2.msra.mxu0 0.0
    %408 = vmatprep.subr.mxu0 0.0
    %409 = vmatpush2.msra.mxu0 0.0
    %410 = vmatprep.subr.mxu0 0.0
    %411 = vmatpush2.msra.mxu0 0.0
    %412 = vmatprep.subr.mxu0 0.0
    %413 = vmatpush2.msra.mxu0 0.0
    %414 = vmatprep.subr.mxu0 0.0
    %415 = vmatpush2.msra.mxu0 0.0
    %416 = vmatprep.mubr.f32.mxu0 0.0
    %417 = vmatmul.mubr.f32.gmra.mxu0 %v328
    %v418 = vpop.f32.mrf.mxu0
    %v419 = vadd.f32 0.0, %v418
    %v420 = vpop.f32.mrf.mxu0
    %421 = vmatprep.mubr.f32.mxu0 0.0
    %422 = vmatmul.mubr.f32.gmra.mxu0 %v329
    %v423 = vpop.f32.mrf.mxu0
    %v424 = vadd.f32 0.0, %v423
    %v425 = vpop.f32.mrf.mxu0
    %426 = vmatprep.mubr.f32.mxu0 0.0
    %427 = vmatmul.mubr.f32.gmra.mxu0 %v330
    %v428 = vpop.f32.mrf.mxu0
    %v429 = vadd.f32 0.0, %v428
    %v430 = vpop.f32.mrf.mxu0
    %431 = vmatprep.mubr.f32.mxu0 0.0
    %432 = vmatmul.mubr.f32.gmra.mxu0 %v331
    %v433 = vpop.f32.mrf.mxu0
    %v434 = vadd.f32 0.0, %v433
    %v435 = vpop.f32.mrf.mxu0
    %436 = vmatprep.mubr.f32.mxu0 0.0
    %437 = vmatmul.mubr.f32.gmra.mxu0 %v332
    %v438 = vpop.f32.mrf.mxu0
    %v439 = vadd.f32 0.0, %v438
    %v440 = vpop.f32.mrf.mxu0
    %441 = vmatprep.mubr.f32.mxu0 0.0
    %442 = vmatmul.mubr.f32.gmra.mxu0 %v333
    %v443 = vpop.f32.mrf.mxu0
    %v444 = vadd.f32 0.0, %v443
    %v445 = vpop.f32.mrf.mxu0
    %446 = vmatprep.mubr.f32.mxu0 0.0
    %447 = vmatmul.mubr.f32.gmra.mxu0 %v334
    %v448 = vpop.f32.mrf.mxu0
    %v449 = vadd.f32 0.0, %v448
    %v450 = vpop.f32.mrf.mxu0
    %451 = vmatprep.mubr.f32.mxu0 0.0
    %452 = vmatmul.mubr.f32.gmra.mxu0 %v335
    %v453 = vpop.f32.mrf.mxu0
    %v454 = vadd.f32 0.0, %v453
    %v455 = vpop.f32.mrf.mxu0
    %456 = vdwg.mxu0
    %457 = vst [vmem:[#allocation2] sm:$0xff] %v419
    %458 = vst [vmem:[#allocation2 + $0x8] sm:$0xff] %v424
    %459 = vst [vmem:[#allocation2 + $0x10] sm:$0xff] %v429
    %460 = vst [vmem:[#allocation2 + $0x18] sm:$0xff] %v434
    %461 = vst [vmem:[#allocation2 + $0x20] sm:$0xff] %v439
    %462 = vst [vmem:[#allocation2 + $0x28] sm:$0xff] %v444
    %463 = vst [vmem:[#allocation2 + $0x30] sm:$0xff] %v449
    %464 = vst [vmem:[#allocation2 + $0x38] sm:$0xff] %v454
    %v465 = vld [vmem:[#allocation2] sm:$0xff]
    %v466 = vld [vmem:[#allocation2 + $0x8] sm:$0xff]
    %v467 = vld [vmem:[#allocation2 + $0x10] sm:$0xff]
    %v468 = vld [vmem:[#allocation2 + $0x18] sm:$0xff]
    %v469 = vld [vmem:[#allocation2 + $0x20] sm:$0xff]
    %v470 = vld [vmem:[#allocation2 + $0x28] sm:$0xff]
    %v471 = vld [vmem:[#allocation2 + $0x30] sm:$0xff]
    %v472 = vld [vmem:[#allocation2 + $0x38] sm:$0xff]
    %v473 = vld [vmem:[%s3 + $0x1] sm:$0x1]
    %v474 = vlaneseq
    %v475 = vshrl.u32 %v474, 7
    %v476 = vsub.s32 0, %v475
    %v477 = vrot.slane %v473, %v476
    %v478 = vadd.f32 %v465, %v477
    %v479 = vadd.f32 %v466, %v477
    %v480 = vadd.f32 %v467, %v477
    %v481 = vadd.f32 %v468, %v477
    %v482 = vadd.f32 %v469, %v477
    %v483 = vadd.f32 %v470, %v477
    %v484 = vadd.f32 %v471, %v477
    %v485 = vadd.f32 %v472, %v477
    %486 = vst [vmem:[#allocation2] sm:$0xff] %v478
    %487 = vst [vmem:[#allocation2 + $0x8] sm:$0xff] %v479
    %488 = vst [vmem:[#allocation2 + $0x10] sm:$0xff] %v480
    %489 = vst [vmem:[#allocation2 + $0x18] sm:$0xff] %v481
    %490 = vst [vmem:[#allocation2 + $0x20] sm:$0xff] %v482
    %491 = vst [vmem:[#allocation2 + $0x28] sm:$0xff] %v483
    %492 = vst [vmem:[#allocation2 + $0x30] sm:$0xff] %v484
    %493 = vst [vmem:[#allocation2 + $0x38] sm:$0xff] %v485
    %v494 = vld [vmem:[#allocation2] sm:$0xff]
    %v495 = vld [vmem:[#allocation2 + $0x8] sm:$0xff]
    %v496 = vld [vmem:[#allocation2 + $0x10] sm:$0xff]
    %v497 = vld [vmem:[#allocation2 + $0x18] sm:$0xff]
    %v498 = vld [vmem:[#allocation2 + $0x20] sm:$0xff]
    %v499 = vld [vmem:[#allocation2 + $0x28] sm:$0xff]
    %v500 = vld [vmem:[#allocation2 + $0x30] sm:$0xff]
    %v501 = vld [vmem:[#allocation2 + $0x38] sm:$0xff]
    %v502 = vadd.f32 %v494, %v495
    %v503 = vadd.f32 %v502, %v496
    %v504 = vadd.f32 %v503, %v497
    %v505 = vadd.f32 %v504, %v498
    %v506 = vadd.f32 %v505, %v499
    %v507 = vadd.f32 %v506, %v500
    %v508 = vadd.f32 %v507, %v501
    %v509 = vrot.slane %v508, 4
    %v510 = vadd.f32 %v508, %v509
    %v511 = vrot.slane %v510, 2
    %v512 = vadd.f32 %v510, %v511
    %v513 = vrot.slane %v512, 1
    %v514 = vadd.f32 %v512, %v513
    %v515 = vmul.f32 %v514, %v243
    %v516 = vsub.f32 %v494, %v515
    %v517 = vsub.f32 %v495, %v515
    %v518 = vsub.f32 %v496, %v515
    %v519 = vsub.f32 %v497, %v515
    %v520 = vsub.f32 %v498, %v515
    %v521 = vsub.f32 %v499, %v515
    %v522 = vsub.f32 %v500, %v515
    %v523 = vsub.f32 %v501, %v515
    %v524 = vmul.f32 %v516, %v516
    %v525 = vmul.f32 %v517, %v517
    %v526 = vmul.f32 %v518, %v518
    %v527 = vmul.f32 %v519, %v519
    %v528 = vmul.f32 %v520, %v520
    %v529 = vmul.f32 %v521, %v521
    %v530 = vmul.f32 %v522, %v522
    %v531 = vmul.f32 %v523, %v523
    %v532 = vadd.f32 %v524, %v525
    %v533 = vadd.f32 %v532, %v526
    %v534 = vadd.f32 %v533, %v527
    %v535 = vadd.f32 %v534, %v528
    %v536 = vadd.f32 %v535, %v529
    %v537 = vadd.f32 %v536, %v530
    %v538 = vadd.f32 %v537, %v531
    %v539 = vrot.slane %v538, 4
    %v540 = vadd.f32 %v538, %v539
    %v541 = vrot.slane %v540, 2
    %v542 = vadd.f32 %v540, %v541
    %v543 = vrot.slane %v542, 1
    %v544 = vadd.f32 %v542, %v543
    %v545 = vmul.f32 %v544, %v243
    %v546 = vld [vmem:[%s4 + $0x1] sm:$0x1]
    %v547 = vadd.f32 %v545, 1e-05
    %v548 = vrsqrt.pop %v547
    %v549 = vmul.f32 %v546, %v548
    %v550 = vlaneseq
    %v551 = vshrl.u32 %v550, 7
    %v552 = vsub.s32 0, %v551
    %v553 = vrot.slane %v549, %v552
    %v554 = vmul.f32 %v516, %v553
    %v555 = vmul.f32 %v517, %v553
    %v556 = vmul.f32 %v518, %v553
    %v557 = vmul.f32 %v519, %v553
    %v558 = vmul.f32 %v520, %v553
    %v559 = vmul.f32 %v521, %v553
    %v560 = vmul.f32 %v522, %v553
    %v561 = vmul.f32 %v523, %v553
    %v562 = vld [vmem:[%s5 + $0x1] sm:$0x1]
    %v563 = vlaneseq
    %v564 = vshrl.u32 %v563, 7
    %v565 = vsub.s32 0, %v564
    %v566 = vrot.slane %v562, %v565
    %v567 = vadd.f32 %v554, %v566
    %v568 = vadd.f32 %v555, %v566
    %v569 = vadd.f32 %v556, %v566
    %v570 = vadd.f32 %v557, %v566
    %v571 = vadd.f32 %v558, %v566
    %v572 = vadd.f32 %v559, %v566
    %v573 = vadd.f32 %v560, %v566
    %v574 = vadd.f32 %v561, %v566
    %v575 = vmax.f32 %v567, 0.0
    %v576 = vmax.f32 %v568, 0.0
    %v577 = vmax.f32 %v569, 0.0
    %v578 = vmax.f32 %v570, 0.0
    %v579 = vmax.f32 %v571, 0.0
    %v580 = vmax.f32 %v572, 0.0
    %v581 = vmax.f32 %v573, 0.0
    %v582 = vmax.f32 %v574, 0.0
    %v583 = vmin.f32 %v575, 6.0
    %v584 = vmin.f32 %v576, 6.0
    %v585 = vmin.f32 %v577, 6.0
    %v586 = vmin.f32 %v578, 6.0
    %v587 = vmin.f32 %v579, 6.0
    %v588 = vmin.f32 %v580, 6.0
    %v589 = vmin.f32 %v581, 6.0
    %v590 = vmin.f32 %v582, 6.0
    %591 = vst [vmem:[#allocation2] sm:$0xff] %v583
    %592 = vst [vmem:[#allocation2 + $0x8] sm:$0xff] %v584
    %593 = vst [vmem:[#allocation2 + $0x10] sm:$0xff] %v585
    %594 = vst [vmem:[#allocation2 + $0x18] sm:$0xff] %v586
    %595 = vst [vmem:[#allocation2 + $0x20] sm:$0xff] %v587
    %596 = vst [vmem:[#allocation2 + $0x28] sm:$0xff] %v588
    %597 = vst [vmem:[#allocation2 + $0x30] sm:$0xff] %v589
    %598 = vst [vmem:[#allocation2 + $0x38] sm:$0xff] %v590
    %v599 = vld [vmem:[#allocation2] sm:$0xff]
    %v600 = vld [vmem:[#allocation2 + $0x8] sm:$0xff]
    %v601 = vld [vmem:[#allocation2 + $0x10] sm:$0xff]
    %v602 = vld [vmem:[#allocation2 + $0x18] sm:$0xff]
    %v603 = vld [vmem:[#allocation2 + $0x20] sm:$0xff]
    %v604 = vld [vmem:[#allocation2 + $0x28] sm:$0xff]
    %v605 = vld [vmem:[#allocation2 + $0x30] sm:$0xff]
    %v606 = vld [vmem:[#allocation2 + $0x38] sm:$0xff]
    %s607 = scalar_lea.vmem [#allocation4], 128
    %v608 = vld [vmem:[%s607] sm:$0xff]
    %v609 = vld [vmem:[%s607 + $0x8] sm:$0xff]
    %v610 = vld [vmem:[%s607 + $0x10] sm:$0xff]
    %v611 = vld [vmem:[%s607 + $0x18] sm:$0xff]
    %v612 = vld [vmem:[%s607 + $0x20] sm:$0xff]
    %v613 = vld [vmem:[%s607 + $0x28] sm:$0xff]
    %v614 = vld [vmem:[%s607 + $0x30] sm:$0xff]
    %v615 = vld [vmem:[%s607 + $0x38] sm:$0xff]
    %v616 = vld [vmem:[%s607 + $0x40] sm:$0xff]
    %v617 = vld [vmem:[%s607 + $0x48] sm:$0xff]
    %v618 = vld [vmem:[%s607 + $0x50] sm:$0xff]
    %v619 = vld [vmem:[%s607 + $0x58] sm:$0xff]
    %v620 = vld [vmem:[%s607 + $0x60] sm:$0xff]
    %v621 = vld [vmem:[%s607 + $0x68] sm:$0xff]
    %v622 = vld [vmem:[%s607 + $0x70] sm:$0xff]
    %v623 = vld [vmem:[%s607 + $0x78] sm:$0xff]
    %624 = vmatprep.subr.mxu0 0.0
    %625 = vmatpush1.msra.mxu0 %v623
    %626 = vmatprep.subr.mxu0 0.0
    %627 = vmatpush1.msra.mxu0 %v622
    %628 = vmatprep.subr.mxu0 0.0
    %629 = vmatpush1.msra.mxu0 %v621
    %630 = vmatprep.subr.mxu0 0.0
    %631 = vmatpush1.msra.mxu0 %v620
    %632 = vmatprep.subr.mxu0 0.0
    %633 = vmatpush1.msra.mxu0 %v619
    %634 = vmatprep.subr.mxu0 0.0
    %635 = vmatpush1.msra.mxu0 %v618
    %636 = vmatprep.subr.mxu0 0.0
    %637 = vmatpush1.msra.mxu0 %v617
    %638 = vmatprep.subr.mxu0 0.0
    %639 = vmatpush1.msra.mxu0 %v616
    %640 = vmatprep.subr.mxu0 0.0
    %641 = vmatpush1.msra.mxu0 %v615
    %642 = vmatprep.subr.mxu0 0.0
    %643 = vmatpush1.msra.mxu0 %v614
    %644 = vmatprep.subr.mxu0 0.0
    %645 = vmatpush1.msra.mxu0 %v613
    %646 = vmatprep.subr.mxu0 0.0
    %647 = vmatpush1.msra.mxu0 %v612
    %648 = vmatprep.subr.mxu0 0.0
    %649 = vmatpush1.msra.mxu0 %v611
    %650 = vmatprep.subr.mxu0 0.0
    %651 = vmatpush1.msra.mxu0 %v610
    %652 = vmatprep.subr.mxu0 0.0
    %653 = vmatpush1.msra.mxu0 %v609
    %654 = vmatprep.subr.mxu0 0.0
    %655 = vmatpush1.msra.mxu0 %v608
    %656 = vmatprep.subr.mxu0 0.0
    %657 = vmatpush2.msra.mxu0 0.0
    %658 = vmatprep.subr.mxu0 0.0
    %659 = vmatpush2.msra.mxu0 0.0
    %660 = vmatprep.subr.mxu0 0.0
    %661 = vmatpush2.msra.mxu0 0.0
    %662 = vmatprep.subr.mxu0 0.0
    %663 = vmatpush2.msra.mxu0 0.0
    %664 = vmatprep.subr.mxu0 0.0
    %665 = vmatpush2.msra.mxu0 0.0
    %666 = vmatprep.subr.mxu0 0.0
    %667 = vmatpush2.msra.mxu0 0.0
    %668 = vmatprep.subr.mxu0 0.0
    %669 = vmatpush2.msra.mxu0 0.0
    %670 = vmatprep.subr.mxu0 0.0
    %671 = vmatpush2.msra.mxu0 0.0
    %672 = vmatprep.subr.mxu0 0.0
    %673 = vmatpush2.msra.mxu0 0.0
    %674 = vmatprep.subr.mxu0 0.0
    %675 = vmatpush2.msra.mxu0 0.0
    %676 = vmatprep.subr.mxu0 0.0
    %677 = vmatpush2.msra.mxu0 0.0
    %678 = vmatprep.subr.mxu0 0.0
    %679 = vmatpush2.msra.mxu0 0.0
    %680 = vmatprep.subr.mxu0 0.0
    %681 = vmatpush2.msra.mxu0 0.0
    %682 = vmatprep.subr.mxu0 0.0
    %683 = vmatpush2.msra.mxu0 0.0
    %684 = vmatprep.subr.mxu0 0.0
    %685 = vmatpush2.msra.mxu0 0.0
    %686 = vmatprep.subr.mxu0 0.0
    %687 = vmatpush2.msra.mxu0 0.0
    %688 = vmatprep.mubr.f32.mxu0 0.0
    %689 = vmatmul.mubr.f32.gmra.mxu0 %v599
    %v690 = vpop.f32.mrf.mxu0
    %v691 = vadd.f32 0.0, %v690
    %v692 = vpop.f32.mrf.mxu0
    %693 = vmatprep.mubr.f32.mxu0 0.0
    %694 = vmatmul.mubr.f32.gmra.mxu0 %v600
    %v695 = vpop.f32.mrf.mxu0
    %v696 = vadd.f32 0.0, %v695
    %v697 = vpop.f32.mrf.mxu0
    %698 = vmatprep.mubr.f32.mxu0 0.0
    %699 = vmatmul.mubr.f32.gmra.mxu0 %v601
    %v700 = vpop.f32.mrf.mxu0
    %v701 = vadd.f32 0.0, %v700
    %v702 = vpop.f32.mrf.mxu0
    %703 = vmatprep.mubr.f32.mxu0 0.0
    %704 = vmatmul.mubr.f32.gmra.mxu0 %v602
    %v705 = vpop.f32.mrf.mxu0
    %v706 = vadd.f32 0.0, %v705
    %v707 = vpop.f32.mrf.mxu0
    %708 = vmatprep.mubr.f32.mxu0 0.0
    %709 = vmatmul.mubr.f32.gmra.mxu0 %v603
    %v710 = vpop.f32.mrf.mxu0
    %v711 = vadd.f32 0.0, %v710
    %v712 = vpop.f32.mrf.mxu0
    %713 = vmatprep.mubr.f32.mxu0 0.0
    %714 = vmatmul.mubr.f32.gmra.mxu0 %v604
    %v715 = vpop.f32.mrf.mxu0
    %v716 = vadd.f32 0.0, %v715
    %v717 = vpop.f32.mrf.mxu0
    %718 = vmatprep.mubr.f32.mxu0 0.0
    %719 = vmatmul.mubr.f32.gmra.mxu0 %v605
    %v720 = vpop.f32.mrf.mxu0
    %v721 = vadd.f32 0.0, %v720
    %v722 = vpop.f32.mrf.mxu0
    %723 = vmatprep.mubr.f32.mxu0 0.0
    %724 = vmatmul.mubr.f32.gmra.mxu0 %v606
    %v725 = vpop.f32.mrf.mxu0
    %v726 = vadd.f32 0.0, %v725
    %v727 = vpop.f32.mrf.mxu0
    %728 = vdwg.mxu0
    %729 = vst [vmem:[#allocation2] sm:$0xff] %v691
    %730 = vst [vmem:[#allocation2 + $0x8] sm:$0xff] %v696
    %731 = vst [vmem:[#allocation2 + $0x10] sm:$0xff] %v701
    %732 = vst [vmem:[#allocation2 + $0x18] sm:$0xff] %v706
    %733 = vst [vmem:[#allocation2 + $0x20] sm:$0xff] %v711
    %734 = vst [vmem:[#allocation2 + $0x28] sm:$0xff] %v716
    %735 = vst [vmem:[#allocation2 + $0x30] sm:$0xff] %v721
    %736 = vst [vmem:[#allocation2 + $0x38] sm:$0xff] %v726
    %v737 = vld [vmem:[#allocation2] sm:$0xff]
    %v738 = vld [vmem:[#allocation2 + $0x8] sm:$0xff]
    %v739 = vld [vmem:[#allocation2 + $0x10] sm:$0xff]
    %v740 = vld [vmem:[#allocation2 + $0x18] sm:$0xff]
    %v741 = vld [vmem:[#allocation2 + $0x20] sm:$0xff]
    %v742 = vld [vmem:[#allocation2 + $0x28] sm:$0xff]
    %v743 = vld [vmem:[#allocation2 + $0x30] sm:$0xff]
    %v744 = vld [vmem:[#allocation2 + $0x38] sm:$0xff]
    %v745 = vld [vmem:[%s3 + $0x2] sm:$0x1]
    %v746 = vlaneseq
    %v747 = vshrl.u32 %v746, 7
    %v748 = vsub.s32 0, %v747
    %v749 = vrot.slane %v745, %v748
    %v750 = vadd.f32 %v737, %v749
    %v751 = vadd.f32 %v738, %v749
    %v752 = vadd.f32 %v739, %v749
    %v753 = vadd.f32 %v740, %v749
    %v754 = vadd.f32 %v741, %v749
    %v755 = vadd.f32 %v742, %v749
    %v756 = vadd.f32 %v743, %v749
    %v757 = vadd.f32 %v744, %v749
    %758 = vst [vmem:[#allocation2] sm:$0xff] %v750
    %759 = vst [vmem:[#allocation2 + $0x8] sm:$0xff] %v751
    %760 = vst [vmem:[#allocation2 + $0x10] sm:$0xff] %v752
    %761 = vst [vmem:[#allocation2 + $0x18] sm:$0xff] %v753
    %762 = vst [vmem:[#allocation2 + $0x20] sm:$0xff] %v754
    %763 = vst [vmem:[#allocation2 + $0x28] sm:$0xff] %v755
    %764 = vst [vmem:[#allocation2 + $0x30] sm:$0xff] %v756
    %765 = vst [vmem:[#allocation2 + $0x38] sm:$0xff] %v757
    %v766 = vld [vmem:[#allocation2] sm:$0xff]
    %v767 = vld [vmem:[#allocation2 + $0x8] sm:$0xff]
    %v768 = vld [vmem:[#allocation2 + $0x10] sm:$0xff]
    %v769 = vld [vmem:[#allocation2 + $0x18] sm:$0xff]
    %v770 = vld [vmem:[#allocation2 + $0x20] sm:$0xff]
    %v771 = vld [vmem:[#allocation2 + $0x28] sm:$0xff]
    %v772 = vld [vmem:[#allocation2 + $0x30] sm:$0xff]
    %v773 = vld [vmem:[#allocation2 + $0x38] sm:$0xff]
    %v774 = vadd.f32 %v766, %v767
    %v775 = vadd.f32 %v774, %v768
    %v776 = vadd.f32 %v775, %v769
    %v777 = vadd.f32 %v776, %v770
    %v778 = vadd.f32 %v777, %v771
    %v779 = vadd.f32 %v778, %v772
    %v780 = vadd.f32 %v779, %v773
    %v781 = vrot.slane %v780, 4
    %v782 = vadd.f32 %v780, %v781
    %v783 = vrot.slane %v782, 2
    %v784 = vadd.f32 %v782, %v783
    %v785 = vrot.slane %v784, 1
    %v786 = vadd.f32 %v784, %v785
    %v787 = vmul.f32 %v786, %v243
    %v788 = vsub.f32 %v766, %v787
    %v789 = vsub.f32 %v767, %v787
    %v790 = vsub.f32 %v768, %v787
    %v791 = vsub.f32 %v769, %v787
    %v792 = vsub.f32 %v770, %v787
    %v793 = vsub.f32 %v771, %v787
    %v794 = vsub.f32 %v772, %v787
    %v795 = vsub.f32 %v773, %v787
    %v796 = vmul.f32 %v788, %v788
    %v797 = vmul.f32 %v789, %v789
    %v798 = vmul.f32 %v790, %v790
    %v799 = vmul.f32 %v791, %v791
    %v800 = vmul.f32 %v792, %v792
    %v801 = vmul.f32 %v793, %v793
    %v802 = vmul.f32 %v794, %v794
    %v803 = vmul.f32 %v795, %v795
    %v804 = vadd.f32 %v796, %v797
    %v805 = vadd.f32 %v804, %v798
    %v806 = vadd.f32 %v805, %v799
    %v807 = vadd.f32 %v806, %v800
    %v808 = vadd.f32 %v807, %v801
    %v809 = vadd.f32 %v808, %v802
    %v810 = vadd.f32 %v809, %v803
    %v811 = vrot.slane %v810, 4
    %v812 = vadd.f32 %v810, %v811
    %v813 = vrot.slane %v812, 2
    %v814 = vadd.f32 %v812, %v813
    %v815 = vrot.slane %v814, 1
    %v816 = vadd.f32 %v814, %v815
    %v817 = vmul.f32 %v816, %v243
    %v818 = vld [vmem:[%s4 + $0x2] sm:$0x1]
    %v819 = vadd.f32 %v817, 1e-05
    %v820 = vrsqrt.pop %v819
    %v821 = vmul.f32 %v818, %v820
    %v822 = vlaneseq
    %v823 = vshrl.u32 %v822, 7
    %v824 = vsub.s32 0, %v823
    %v825 = vrot.slane %v821, %v824
    %v826 = vmul.f32 %v788, %v825
    %v827 = vmul.f32 %v789, %v825
    %v828 = vmul.f32 %v790, %v825
    %v829 = vmul.f32 %v791, %v825
    %v830 = vmul.f32 %v792, %v825
    %v831 = vmul.f32 %v793, %v825
    %v832 = vmul.f32 %v794, %v825
    %v833 = vmul.f32 %v795, %v825
    %v834 = vld [vmem:[%s5 + $0x2] sm:$0x1]
    %v835 = vlaneseq
    %v836 = vshrl.u32 %v835, 7
    %v837 = vsub.s32 0, %v836
    %v838 = vrot.slane %v834, %v837
    %v839 = vadd.f32 %v826, %v838
    %v840 = vadd.f32 %v827, %v838
    %v841 = vadd.f32 %v828, %v838
    %v842 = vadd.f32 %v829, %v838
    %v843 = vadd.f32 %v830, %v838
    %v844 = vadd.f32 %v831, %v838
    %v845 = vadd.f32 %v832, %v838
    %v846 = vadd.f32 %v833, %v838
    %v847 = vmax.f32 %v839, 0.0
    %v848 = vmax.f32 %v840, 0.0
    %v849 = vmax.f32 %v841, 0.0
    %v850 = vmax.f32 %v842, 0.0
    %v851 = vmax.f32 %v843, 0.0
    %v852 = vmax.f32 %v844, 0.0
    %v853 = vmax.f32 %v845, 0.0
    %v854 = vmax.f32 %v846, 0.0
    %v855 = vmin.f32 %v847, 6.0
    %v856 = vmin.f32 %v848, 6.0
    %v857 = vmin.f32 %v849, 6.0
    %v858 = vmin.f32 %v850, 6.0
    %v859 = vmin.f32 %v851, 6.0
    %v860 = vmin.f32 %v852, 6.0
    %v861 = vmin.f32 %v853, 6.0
    %v862 = vmin.f32 %v854, 6.0
    %863 = vst [vmem:[#allocation2] sm:$0xff] %v855
    %864 = vst [vmem:[#allocation2 + $0x8] sm:$0xff] %v856
    %865 = vst [vmem:[#allocation2 + $0x10] sm:$0xff] %v857
    %866 = vst [vmem:[#allocation2 + $0x18] sm:$0xff] %v858
    %867 = vst [vmem:[#allocation2 + $0x20] sm:$0xff] %v859
    %868 = vst [vmem:[#allocation2 + $0x28] sm:$0xff] %v860
    %869 = vst [vmem:[#allocation2 + $0x30] sm:$0xff] %v861
    %870 = vst [vmem:[#allocation2 + $0x38] sm:$0xff] %v862
    %v871 = vld [vmem:[#allocation2] sm:$0xff]
    %v872 = vld [vmem:[#allocation2 + $0x8] sm:$0xff]
    %v873 = vld [vmem:[#allocation2 + $0x10] sm:$0xff]
    %v874 = vld [vmem:[#allocation2 + $0x18] sm:$0xff]
    %v875 = vld [vmem:[#allocation2 + $0x20] sm:$0xff]
    %v876 = vld [vmem:[#allocation2 + $0x28] sm:$0xff]
    %v877 = vld [vmem:[#allocation2 + $0x30] sm:$0xff]
    %v878 = vld [vmem:[#allocation2 + $0x38] sm:$0xff]
    %s879 = scalar_lea.vmem [#allocation4], 256
    %v880 = vld [vmem:[%s879] sm:$0xff]
    %v881 = vld [vmem:[%s879 + $0x8] sm:$0xff]
    %v882 = vld [vmem:[%s879 + $0x10] sm:$0xff]
    %v883 = vld [vmem:[%s879 + $0x18] sm:$0xff]
    %v884 = vld [vmem:[%s879 + $0x20] sm:$0xff]
    %v885 = vld [vmem:[%s879 + $0x28] sm:$0xff]
    %v886 = vld [vmem:[%s879 + $0x30] sm:$0xff]
    %v887 = vld [vmem:[%s879 + $0x38] sm:$0xff]
    %v888 = vld [vmem:[%s879 + $0x40] sm:$0xff]
    %v889 = vld [vmem:[%s879 + $0x48] sm:$0xff]
    %v890 = vld [vmem:[%s879 + $0x50] sm:$0xff]
    %v891 = vld [vmem:[%s879 + $0x58] sm:$0xff]
    %v892 = vld [vmem:[%s879 + $0x60] sm:$0xff]
    %v893 = vld [vmem:[%s879 + $0x68] sm:$0xff]
    %v894 = vld [vmem:[%s879 + $0x70] sm:$0xff]
    %v895 = vld [vmem:[%s879 + $0x78] sm:$0xff]
    %896 = vmatprep.subr.mxu0 0.0
    %897 = vmatpush1.msra.mxu0 %v895
    %898 = vmatprep.subr.mxu0 0.0
    %899 = vmatpush1.msra.mxu0 %v894
    %900 = vmatprep.subr.mxu0 0.0
    %901 = vmatpush1.msra.mxu0 %v893
    %902 = vmatprep.subr.mxu0 0.0
    %903 = vmatpush1.msra.mxu0 %v892
    %904 = vmatprep.subr.mxu0 0.0
    %905 = vmatpush1.msra.mxu0 %v891
    %906 = vmatprep.subr.mxu0 0.0
    %907 = vmatpush1.msra.mxu0 %v890
    %908 = vmatprep.subr.mxu0 0.0
    %909 = vmatpush1.msra.mxu0 %v889
    %910 = vmatprep.subr.mxu0 0.0
    %911 = vmatpush1.msra.mxu0 %v888
    %912 = vmatprep.subr.mxu0 0.0
    %913 = vmatpush1.msra.mxu0 %v887
    %914 = vmatprep.subr.mxu0 0.0
    %915 = vmatpush1.msra.mxu0 %v886
    %916 = vmatprep.subr.mxu0 0.0
    %917 = vmatpush1.msra.mxu0 %v885
    %918 = vmatprep.subr.mxu0 0.0
    %919 = vmatpush1.msra.mxu0 %v884
    %920 = vmatprep.subr.mxu0 0.0
    %921 = vmatpush1.msra.mxu0 %v883
    %922 = vmatprep.subr.mxu0 0.0
    %923 = vmatpush1.msra.mxu0 %v882
    %924 = vmatprep.subr.mxu0 0.0
    %925 = vmatpush1.msra.mxu0 %v881
    %926 = vmatprep.subr.mxu0 0.0
    %927 = vmatpush1.msra.mxu0 %v880
    %928 = vmatprep.subr.mxu0 0.0
    %929 = vmatpush2.msra.mxu0 0.0
    %930 = vmatprep.subr.mxu0 0.0
    %931 = vmatpush2.msra.mxu0 0.0
    %932 = vmatprep.subr.mxu0 0.0
    %933 = vmatpush2.msra.mxu0 0.0
    %934 = vmatprep.subr.mxu0 0.0
    %935 = vmatpush2.msra.mxu0 0.0
    %936 = vmatprep.subr.mxu0 0.0
    %937 = vmatpush2.msra.mxu0 0.0
    %938 = vmatprep.subr.mxu0 0.0
    %939 = vmatpush2.msra.mxu0 0.0
    %940 = vmatprep.subr.mxu0 0.0
    %941 = vmatpush2.msra.mxu0 0.0
    %942 = vmatprep.subr.mxu0 0.0
    %943 = vmatpush2.msra.mxu0 0.0
    %944 = vmatprep.subr.mxu0 0.0
    %945 = vmatpush2.msra.mxu0 0.0
    %946 = vmatprep.subr.mxu0 0.0
    %947 = vmatpush2.msra.mxu0 0.0
    %948 = vmatprep.subr.mxu0 0.0
    %949 = vmatpush2.msra.mxu0 0.0
    %950 = vmatprep.subr.mxu0 0.0
    %951 = vmatpush2.msra.mxu0 0.0
    %952 = vmatprep.subr.mxu0 0.0
    %953 = vmatpush2.msra.mxu0 0.0
    %954 = vmatprep.subr.mxu0 0.0
    %955 = vmatpush2.msra.mxu0 0.0
    %956 = vmatprep.subr.mxu0 0.0
    %957 = vmatpush2.msra.mxu0 0.0
    %958 = vmatprep.subr.mxu0 0.0
    %959 = vmatpush2.msra.mxu0 0.0
    %960 = vmatprep.mubr.f32.mxu0 0.0
    %961 = vmatmul.mubr.f32.gmra.mxu0 %v871
    %v962 = vpop.f32.mrf.mxu0
    %v963 = vadd.f32 0.0, %v962
    %v964 = vpop.f32.mrf.mxu0
    %965 = vmatprep.mubr.f32.mxu0 0.0
    %966 = vmatmul.mubr.f32.gmra.mxu0 %v872
    %v967 = vpop.f32.mrf.mxu0
    %v968 = vadd.f32 0.0, %v967
    %v969 = vpop.f32.mrf.mxu0
    %970 = vmatprep.mubr.f32.mxu0 0.0
    %971 = vmatmul.mubr.f32.gmra.mxu0 %v873
    %v972 = vpop.f32.mrf.mxu0
    %v973 = vadd.f32 0.0, %v972
    %v974 = vpop.f32.mrf.mxu0
    %975 = vmatprep.mubr.f32.mxu0 0.0
    %976 = vmatmul.mubr.f32.gmra.mxu0 %v874
    %v977 = vpop.f32.mrf.mxu0
    %v978 = vadd.f32 0.0, %v977
    %v979 = vpop.f32.mrf.mxu0
    %980 = vmatprep.mubr.f32.mxu0 0.0
    %981 = vmatmul.mubr.f32.gmra.mxu0 %v875
    %v982 = vpop.f32.mrf.mxu0
    %v983 = vadd.f32 0.0, %v982
    %v984 = vpop.f32.mrf.mxu0
    %985 = vmatprep.mubr.f32.mxu0 0.0
    %986 = vmatmul.mubr.f32.gmra.mxu0 %v876
    %v987 = vpop.f32.mrf.mxu0
    %v988 = vadd.f32 0.0, %v987
    %v989 = vpop.f32.mrf.mxu0
    %990 = vmatprep.mubr.f32.mxu0 0.0
    %991 = vmatmul.mubr.f32.gmra.mxu0 %v877
    %v992 = vpop.f32.mrf.mxu0
    %v993 = vadd.f32 0.0, %v992
    %v994 = vpop.f32.mrf.mxu0
    %995 = vmatprep.mubr.f32.mxu0 0.0
    %996 = vmatmul.mubr.f32.gmra.mxu0 %v878
    %v997 = vpop.f32.mrf.mxu0
    %v998 = vadd.f32 0.0, %v997
    %v999 = vpop.f32.mrf.mxu0
    %1000 = vdwg.mxu0
    %1001 = vst [vmem:[#allocation2] sm:$0xff] %v963
    %1002 = vst [vmem:[#allocation2 + $0x8] sm:$0xff] %v968
    %1003 = vst [vmem:[#allocation2 + $0x10] sm:$0xff] %v973
    %1004 = vst [vmem:[#allocation2 + $0x18] sm:$0xff] %v978
    %1005 = vst [vmem:[#allocation2 + $0x20] sm:$0xff] %v983
    %1006 = vst [vmem:[#allocation2 + $0x28] sm:$0xff] %v988
    %1007 = vst [vmem:[#allocation2 + $0x30] sm:$0xff] %v993
    %1008 = vst [vmem:[#allocation2 + $0x38] sm:$0xff] %v998
    %v1009 = vld [vmem:[#allocation2] sm:$0xff]
    %v1010 = vld [vmem:[#allocation2 + $0x8] sm:$0xff]
    %v1011 = vld [vmem:[#allocation2 + $0x10] sm:$0xff]
    %v1012 = vld [vmem:[#allocation2 + $0x18] sm:$0xff]
    %v1013 = vld [vmem:[#allocation2 + $0x20] sm:$0xff]
    %v1014 = vld [vmem:[#allocation2 + $0x28] sm:$0xff]
    %v1015 = vld [vmem:[#allocation2 + $0x30] sm:$0xff]
    %v1016 = vld [vmem:[#allocation2 + $0x38] sm:$0xff]
    %v1017 = vld [vmem:[%s3 + $0x3] sm:$0x1]
    %v1018 = vlaneseq
    %v1019 = vshrl.u32 %v1018, 7
    %v1020 = vsub.s32 0, %v1019
    %v1021 = vrot.slane %v1017, %v1020
    %v1022 = vadd.f32 %v1009, %v1021
    %v1023 = vadd.f32 %v1010, %v1021
    %v1024 = vadd.f32 %v1011, %v1021
    %v1025 = vadd.f32 %v1012, %v1021
    %v1026 = vadd.f32 %v1013, %v1021
    %v1027 = vadd.f32 %v1014, %v1021
    %v1028 = vadd.f32 %v1015, %v1021
    %v1029 = vadd.f32 %v1016, %v1021
    %1030 = vst [vmem:[#allocation2] sm:$0xff] %v1022
    %1031 = vst [vmem:[#allocation2 + $0x8] sm:$0xff] %v1023
    %1032 = vst [vmem:[#allocation2 + $0x10] sm:$0xff] %v1024
    %1033 = vst [vmem:[#allocation2 + $0x18] sm:$0xff] %v1025
    %1034 = vst [vmem:[#allocation2 + $0x20] sm:$0xff] %v1026
    %1035 = vst [vmem:[#allocation2 + $0x28] sm:$0xff] %v1027
    %1036 = vst [vmem:[#allocation2 + $0x30] sm:$0xff] %v1028
    %1037 = vst [vmem:[#allocation2 + $0x38] sm:$0xff] %v1029
    %v1038 = vld [vmem:[#allocation2] sm:$0xff]
    %v1039 = vld [vmem:[#allocation2 + $0x8] sm:$0xff]
    %v1040 = vld [vmem:[#allocation2 + $0x10] sm:$0xff]
    %v1041 = vld [vmem:[#allocation2 + $0x18] sm:$0xff]
    %v1042 = vld [vmem:[#allocation2 + $0x20] sm:$0xff]
    %v1043 = vld [vmem:[#allocation2 + $0x28] sm:$0xff]
    %v1044 = vld [vmem:[#allocation2 + $0x30] sm:$0xff]
    %v1045 = vld [vmem:[#allocation2 + $0x38] sm:$0xff]
    %v1046 = vadd.f32 %v1038, %v1039
    %v1047 = vadd.f32 %v1046, %v1040
    %v1048 = vadd.f32 %v1047, %v1041
    %v1049 = vadd.f32 %v1048, %v1042
    %v1050 = vadd.f32 %v1049, %v1043
    %v1051 = vadd.f32 %v1050, %v1044
    %v1052 = vadd.f32 %v1051, %v1045
    %v1053 = vrot.slane %v1052, 4
    %v1054 = vadd.f32 %v1052, %v1053
    %v1055 = vrot.slane %v1054, 2
    %v1056 = vadd.f32 %v1054, %v1055
    %v1057 = vrot.slane %v1056, 1
    %v1058 = vadd.f32 %v1056, %v1057
    %v1059 = vmul.f32 %v1058, %v243
    %v1060 = vsub.f32 %v1038, %v1059
    %v1061 = vsub.f32 %v1039, %v1059
    %v1062 = vsub.f32 %v1040, %v1059
    %v1063 = vsub.f32 %v1041, %v1059
    %v1064 = vsub.f32 %v1042, %v1059
    %v1065 = vsub.f32 %v1043, %v1059
    %v1066 = vsub.f32 %v1044, %v1059
    %v1067 = vsub.f32 %v1045, %v1059
    %v1068 = vmul.f32 %v1060, %v1060
    %v1069 = vmul.f32 %v1061, %v1061
    %v1070 = vmul.f32 %v1062, %v1062
    %v1071 = vmul.f32 %v1063, %v1063
    %v1072 = vmul.f32 %v1064, %v1064
    %v1073 = vmul.f32 %v1065, %v1065
    %v1074 = vmul.f32 %v1066, %v1066
    %v1075 = vmul.f32 %v1067, %v1067
    %v1076 = vadd.f32 %v1068, %v1069
    %v1077 = vadd.f32 %v1076, %v1070
    %v1078 = vadd.f32 %v1077, %v1071
    %v1079 = vadd.f32 %v1078, %v1072
    %v1080 = vadd.f32 %v1079, %v1073
    %v1081 = vadd.f32 %v1080, %v1074
    %v1082 = vadd.f32 %v1081, %v1075
    %v1083 = vrot.slane %v1082, 4
    %v1084 = vadd.f32 %v1082, %v1083
    %v1085 = vrot.slane %v1084, 2
    %v1086 = vadd.f32 %v1084, %v1085
    %v1087 = vrot.slane %v1086, 1
    %v1088 = vadd.f32 %v1086, %v1087
    %v1089 = vmul.f32 %v1088, %v243
    %v1090 = vld [vmem:[%s4 + $0x3] sm:$0x1]
    %v1091 = vadd.f32 %v1089, 1e-05
    %v1092 = vrsqrt.pop %v1091
    %v1093 = vmul.f32 %v1090, %v1092
    %v1094 = vlaneseq
    %v1095 = vshrl.u32 %v1094, 7
    %v1096 = vsub.s32 0, %v1095
    %v1097 = vrot.slane %v1093, %v1096
    %v1098 = vmul.f32 %v1060, %v1097
    %v1099 = vmul.f32 %v1061, %v1097
    %v1100 = vmul.f32 %v1062, %v1097
    %v1101 = vmul.f32 %v1063, %v1097
    %v1102 = vmul.f32 %v1064, %v1097
    %v1103 = vmul.f32 %v1065, %v1097
    %v1104 = vmul.f32 %v1066, %v1097
    %v1105 = vmul.f32 %v1067, %v1097
    %v1106 = vld [vmem:[%s5 + $0x3] sm:$0x1]
    %v1107 = vlaneseq
    %v1108 = vshrl.u32 %v1107, 7
    %v1109 = vsub.s32 0, %v1108
    %v1110 = vrot.slane %v1106, %v1109
    %v1111 = vadd.f32 %v1098, %v1110
    %v1112 = vadd.f32 %v1099, %v1110
    %v1113 = vadd.f32 %v1100, %v1110
    %v1114 = vadd.f32 %v1101, %v1110
    %v1115 = vadd.f32 %v1102, %v1110
    %v1116 = vadd.f32 %v1103, %v1110
    %v1117 = vadd.f32 %v1104, %v1110
    %v1118 = vadd.f32 %v1105, %v1110
    %v1119 = vmax.f32 %v1111, 0.0
    %v1120 = vmax.f32 %v1112, 0.0
    %v1121 = vmax.f32 %v1113, 0.0
    %v1122 = vmax.f32 %v1114, 0.0
    %v1123 = vmax.f32 %v1115, 0.0
    %v1124 = vmax.f32 %v1116, 0.0
    %v1125 = vmax.f32 %v1117, 0.0
    %v1126 = vmax.f32 %v1118, 0.0
    %v1127 = vmin.f32 %v1119, 6.0
    %v1128 = vmin.f32 %v1120, 6.0
    %v1129 = vmin.f32 %v1121, 6.0
    %v1130 = vmin.f32 %v1122, 6.0
    %v1131 = vmin.f32 %v1123, 6.0
    %v1132 = vmin.f32 %v1124, 6.0
    %v1133 = vmin.f32 %v1125, 6.0
    %v1134 = vmin.f32 %v1126, 6.0
    %1135 = vst [vmem:[#allocation2] sm:$0xff] %v1127
    %1136 = vst [vmem:[#allocation2 + $0x8] sm:$0xff] %v1128
    %1137 = vst [vmem:[#allocation2 + $0x10] sm:$0xff] %v1129
    %1138 = vst [vmem:[#allocation2 + $0x18] sm:$0xff] %v1130
    %1139 = vst [vmem:[#allocation2 + $0x20] sm:$0xff] %v1131
    %1140 = vst [vmem:[#allocation2 + $0x28] sm:$0xff] %v1132
    %1141 = vst [vmem:[#allocation2 + $0x30] sm:$0xff] %v1133
    %1142 = vst [vmem:[#allocation2 + $0x38] sm:$0xff] %v1134
    %v1143 = vld [vmem:[#allocation2] sm:$0xff]
    %v1144 = vld [vmem:[#allocation2 + $0x8] sm:$0xff]
    %v1145 = vld [vmem:[#allocation2 + $0x10] sm:$0xff]
    %v1146 = vld [vmem:[#allocation2 + $0x18] sm:$0xff]
    %v1147 = vld [vmem:[#allocation2 + $0x20] sm:$0xff]
    %v1148 = vld [vmem:[#allocation2 + $0x28] sm:$0xff]
    %v1149 = vld [vmem:[#allocation2 + $0x30] sm:$0xff]
    %v1150 = vld [vmem:[#allocation2 + $0x38] sm:$0xff]
    %s1151 = scalar_lea.vmem [#allocation4], 384
    %v1152 = vld [vmem:[%s1151] sm:$0xff]
    %v1153 = vld [vmem:[%s1151 + $0x8] sm:$0xff]
    %v1154 = vld [vmem:[%s1151 + $0x10] sm:$0xff]
    %v1155 = vld [vmem:[%s1151 + $0x18] sm:$0xff]
    %v1156 = vld [vmem:[%s1151 + $0x20] sm:$0xff]
    %v1157 = vld [vmem:[%s1151 + $0x28] sm:$0xff]
    %v1158 = vld [vmem:[%s1151 + $0x30] sm:$0xff]
    %v1159 = vld [vmem:[%s1151 + $0x38] sm:$0xff]
    %v1160 = vld [vmem:[%s1151 + $0x40] sm:$0xff]
    %v1161 = vld [vmem:[%s1151 + $0x48] sm:$0xff]
    %v1162 = vld [vmem:[%s1151 + $0x50] sm:$0xff]
    %v1163 = vld [vmem:[%s1151 + $0x58] sm:$0xff]
    %v1164 = vld [vmem:[%s1151 + $0x60] sm:$0xff]
    %v1165 = vld [vmem:[%s1151 + $0x68] sm:$0xff]
    %v1166 = vld [vmem:[%s1151 + $0x70] sm:$0xff]
    %v1167 = vld [vmem:[%s1151 + $0x78] sm:$0xff]
    %1168 = vmatprep.subr.mxu0 0.0
    %1169 = vmatpush1.msra.mxu0 %v1167
    %1170 = vmatprep.subr.mxu0 0.0
    %1171 = vmatpush1.msra.mxu0 %v1166
    %1172 = vmatprep.subr.mxu0 0.0
    %1173 = vmatpush1.msra.mxu0 %v1165
    %1174 = vmatprep.subr.mxu0 0.0
    %1175 = vmatpush1.msra.mxu0 %v1164
    %1176 = vmatprep.subr.mxu0 0.0
    %1177 = vmatpush1.msra.mxu0 %v1163
    %1178 = vmatprep.subr.mxu0 0.0
    %1179 = vmatpush1.msra.mxu0 %v1162
    %1180 = vmatprep.subr.mxu0 0.0
    %1181 = vmatpush1.msra.mxu0 %v1161
    %1182 = vmatprep.subr.mxu0 0.0
    %1183 = vmatpush1.msra.mxu0 %v1160
    %1184 = vmatprep.subr.mxu0 0.0
    %1185 = vmatpush1.msra.mxu0 %v1159
    %1186 = vmatprep.subr.mxu0 0.0
    %1187 = vmatpush1.msra.mxu0 %v1158
    %1188 = vmatprep.subr.mxu0 0.0
    %1189 = vmatpush1.msra.mxu0 %v1157
    %1190 = vmatprep.subr.mxu0 0.0
    %1191 = vmatpush1.msra.mxu0 %v1156
    %1192 = vmatprep.subr.mxu0 0.0
    %1193 = vmatpush1.msra.mxu0 %v1155
    %1194 = vmatprep.subr.mxu0 0.0
    %1195 = vmatpush1.msra.mxu0 %v1154
    %1196 = vmatprep.subr.mxu0 0.0
    %1197 = vmatpush1.msra.mxu0 %v1153
    %1198 = vmatprep.subr.mxu0 0.0
    %1199 = vmatpush1.msra.mxu0 %v1152
    %1200 = vmatprep.subr.mxu0 0.0
    %1201 = vmatpush2.msra.mxu0 0.0
    %1202 = vmatprep.subr.mxu0 0.0
    %1203 = vmatpush2.msra.mxu0 0.0
    %1204 = vmatprep.subr.mxu0 0.0
    %1205 = vmatpush2.msra.mxu0 0.0
    %1206 = vmatprep.subr.mxu0 0.0
    %1207 = vmatpush2.msra.mxu0 0.0
    %1208 = vmatprep.subr.mxu0 0.0
    %1209 = vmatpush2.msra.mxu0 0.0
    %1210 = vmatprep.subr.mxu0 0.0
    %1211 = vmatpush2.msra.mxu0 0.0
    %1212 = vmatprep.subr.mxu0 0.0
    %1213 = vmatpush2.msra.mxu0 0.0
    %1214 = vmatprep.subr.mxu0 0.0
    %1215 = vmatpush2.msra.mxu0 0.0
    %1216 = vmatprep.subr.mxu0 0.0
    %1217 = vmatpush2.msra.mxu0 0.0
    %1218 = vmatprep.subr.mxu0 0.0
    %1219 = vmatpush2.msra.mxu0 0.0
    %1220 = vmatprep.subr.mxu0 0.0
    %1221 = vmatpush2.msra.mxu0 0.0
    %1222 = vmatprep.subr.mxu0 0.0
    %1223 = vmatpush2.msra.mxu0 0.0
    %1224 = vmatprep.subr.mxu0 0.0
    %1225 = vmatpush2.msra.mxu0 0.0
    %1226 = vmatprep.subr.mxu0 0.0
    %1227 = vmatpush2.msra.mxu0 0.0
    %1228 = vmatprep.subr.mxu0 0.0
    %1229 = vmatpush2.msra.mxu0 0.0
    %1230 = vmatprep.subr.mxu0 0.0
    %1231 = vmatpush2.msra.mxu0 0.0
    %1232 = vmatprep.mubr.f32.mxu0 0.0
    %1233 = vmatmul.mubr.f32.gmra.mxu0 %v1143
    %v1234 = vpop.f32.mrf.mxu0
    %v1235 = vadd.f32 0.0, %v1234
    %v1236 = vpop.f32.mrf.mxu0
    %1237 = vmatprep.mubr.f32.mxu0 0.0
    %1238 = vmatmul.mubr.f32.gmra.mxu0 %v1144
    %v1239 = vpop.f32.mrf.mxu0
    %v1240 = vadd.f32 0.0, %v1239
    %v1241 = vpop.f32.mrf.mxu0
    %1242 = vmatprep.mubr.f32.mxu0 0.0
    %1243 = vmatmul.mubr.f32.gmra.mxu0 %v1145
    %v1244 = vpop.f32.mrf.mxu0
    %v1245 = vadd.f32 0.0, %v1244
    %v1246 = vpop.f32.mrf.mxu0
    %1247 = vmatprep.mubr.f32.mxu0 0.0
    %1248 = vmatmul.mubr.f32.gmra.mxu0 %v1146
    %v1249 = vpop.f32.mrf.mxu0
    %v1250 = vadd.f32 0.0, %v1249
    %v1251 = vpop.f32.mrf.mxu0
    %1252 = vmatprep.mubr.f32.mxu0 0.0
    %1253 = vmatmul.mubr.f32.gmra.mxu0 %v1147
    %v1254 = vpop.f32.mrf.mxu0
    %v1255 = vadd.f32 0.0, %v1254
    %v1256 = vpop.f32.mrf.mxu0
    %1257 = vmatprep.mubr.f32.mxu0 0.0
    %1258 = vmatmul.mubr.f32.gmra.mxu0 %v1148
    %v1259 = vpop.f32.mrf.mxu0
    %v1260 = vadd.f32 0.0, %v1259
    %v1261 = vpop.f32.mrf.mxu0
    %1262 = vmatprep.mubr.f32.mxu0 0.0
    %1263 = vmatmul.mubr.f32.gmra.mxu0 %v1149
    %v1264 = vpop.f32.mrf.mxu0
    %v1265 = vadd.f32 0.0, %v1264
    %v1266 = vpop.f32.mrf.mxu0
    %1267 = vmatprep.mubr.f32.mxu0 0.0
    %1268 = vmatmul.mubr.f32.gmra.mxu0 %v1150
    %v1269 = vpop.f32.mrf.mxu0
    %v1270 = vadd.f32 0.0, %v1269
    %v1271 = vpop.f32.mrf.mxu0
    %1272 = vdwg.mxu0
    %1273 = vst [vmem:[#allocation2] sm:$0xff] %v1235
    %1274 = vst [vmem:[#allocation2 + $0x8] sm:$0xff] %v1240
    %1275 = vst [vmem:[#allocation2 + $0x10] sm:$0xff] %v1245
    %1276 = vst [vmem:[#allocation2 + $0x18] sm:$0xff] %v1250
    %1277 = vst [vmem:[#allocation2 + $0x20] sm:$0xff] %v1255
    %1278 = vst [vmem:[#allocation2 + $0x28] sm:$0xff] %v1260
    %1279 = vst [vmem:[#allocation2 + $0x30] sm:$0xff] %v1265
    %1280 = vst [vmem:[#allocation2 + $0x38] sm:$0xff] %v1270
    %v1281 = vld [vmem:[#allocation2] sm:$0xff]
    %v1282 = vld [vmem:[#allocation2 + $0x8] sm:$0xff]
    %v1283 = vld [vmem:[#allocation2 + $0x10] sm:$0xff]
    %v1284 = vld [vmem:[#allocation2 + $0x18] sm:$0xff]
    %v1285 = vld [vmem:[#allocation2 + $0x20] sm:$0xff]
    %v1286 = vld [vmem:[#allocation2 + $0x28] sm:$0xff]
    %v1287 = vld [vmem:[#allocation2 + $0x30] sm:$0xff]
    %v1288 = vld [vmem:[#allocation2 + $0x38] sm:$0xff]
    %v1289 = vld [vmem:[%s3 + $0x4] sm:$0x1]
    %v1290 = vlaneseq
    %v1291 = vshrl.u32 %v1290, 7
    %v1292 = vsub.s32 0, %v1291
    %v1293 = vrot.slane %v1289, %v1292
    %v1294 = vadd.f32 %v1281, %v1293
    %v1295 = vadd.f32 %v1282, %v1293
    %v1296 = vadd.f32 %v1283, %v1293
    %v1297 = vadd.f32 %v1284, %v1293
    %v1298 = vadd.f32 %v1285, %v1293
    %v1299 = vadd.f32 %v1286, %v1293
    %v1300 = vadd.f32 %v1287, %v1293
    %v1301 = vadd.f32 %v1288, %v1293
    %1302 = vst [vmem:[#allocation2] sm:$0xff] %v1294
    %1303 = vst [vmem:[#allocation2 + $0x8] sm:$0xff] %v1295
    %1304 = vst [vmem:[#allocation2 + $0x10] sm:$0xff] %v1296
    %1305 = vst [vmem:[#allocation2 + $0x18] sm:$0xff] %v1297
    %1306 = vst [vmem:[#allocation2 + $0x20] sm:$0xff] %v1298
    %1307 = vst [vmem:[#allocation2 + $0x28] sm:$0xff] %v1299
    %1308 = vst [vmem:[#allocation2 + $0x30] sm:$0xff] %v1300
    %1309 = vst [vmem:[#allocation2 + $0x38] sm:$0xff] %v1301
    %v1310 = vld [vmem:[#allocation2] sm:$0xff]
    %v1311 = vld [vmem:[#allocation2 + $0x8] sm:$0xff]
    %v1312 = vld [vmem:[#allocation2 + $0x10] sm:$0xff]
    %v1313 = vld [vmem:[#allocation2 + $0x18] sm:$0xff]
    %v1314 = vld [vmem:[#allocation2 + $0x20] sm:$0xff]
    %v1315 = vld [vmem:[#allocation2 + $0x28] sm:$0xff]
    %v1316 = vld [vmem:[#allocation2 + $0x30] sm:$0xff]
    %v1317 = vld [vmem:[#allocation2 + $0x38] sm:$0xff]
    %v1318 = vadd.f32 %v1310, %v1311
    %v1319 = vadd.f32 %v1318, %v1312
    %v1320 = vadd.f32 %v1319, %v1313
    %v1321 = vadd.f32 %v1320, %v1314
    %v1322 = vadd.f32 %v1321, %v1315
    %v1323 = vadd.f32 %v1322, %v1316
    %v1324 = vadd.f32 %v1323, %v1317
    %v1325 = vrot.slane %v1324, 4
    %v1326 = vadd.f32 %v1324, %v1325
    %v1327 = vrot.slane %v1326, 2
    %v1328 = vadd.f32 %v1326, %v1327
    %v1329 = vrot.slane %v1328, 1
    %v1330 = vadd.f32 %v1328, %v1329
    %v1331 = vmul.f32 %v1330, %v243
    %v1332 = vsub.f32 %v1310, %v1331
    %v1333 = vsub.f32 %v1311, %v1331
    %v1334 = vsub.f32 %v1312, %v1331
    %v1335 = vsub.f32 %v1313, %v1331
    %v1336 = vsub.f32 %v1314, %v1331
    %v1337 = vsub.f32 %v1315, %v1331
    %v1338 = vsub.f32 %v1316, %v1331
    %v1339 = vsub.f32 %v1317, %v1331
    %v1340 = vmul.f32 %v1332, %v1332
    %v1341 = vmul.f32 %v1333, %v1333
    %v1342 = vmul.f32 %v1334, %v1334
    %v1343 = vmul.f32 %v1335, %v1335
    %v1344 = vmul.f32 %v1336, %v1336
    %v1345 = vmul.f32 %v1337, %v1337
    %v1346 = vmul.f32 %v1338, %v1338
    %v1347 = vmul.f32 %v1339, %v1339
    %v1348 = vadd.f32 %v1340, %v1341
    %v1349 = vadd.f32 %v1348, %v1342
    %v1350 = vadd.f32 %v1349, %v1343
    %v1351 = vadd.f32 %v1350, %v1344
    %v1352 = vadd.f32 %v1351, %v1345
    %v1353 = vadd.f32 %v1352, %v1346
    %v1354 = vadd.f32 %v1353, %v1347
    %v1355 = vrot.slane %v1354, 4
    %v1356 = vadd.f32 %v1354, %v1355
    %v1357 = vrot.slane %v1356, 2
    %v1358 = vadd.f32 %v1356, %v1357
    %v1359 = vrot.slane %v1358, 1
    %v1360 = vadd.f32 %v1358, %v1359
    %v1361 = vmul.f32 %v1360, %v243
    %v1362 = vld [vmem:[%s4 + $0x4] sm:$0x1]
    %v1363 = vadd.f32 %v1361, 1e-05
    %v1364 = vrsqrt.pop %v1363
    %v1365 = vmul.f32 %v1362, %v1364
    %v1366 = vlaneseq
    %v1367 = vshrl.u32 %v1366, 7
    %v1368 = vsub.s32 0, %v1367
    %v1369 = vrot.slane %v1365, %v1368
    %v1370 = vmul.f32 %v1332, %v1369
    %v1371 = vmul.f32 %v1333, %v1369
    %v1372 = vmul.f32 %v1334, %v1369
    %v1373 = vmul.f32 %v1335, %v1369
    %v1374 = vmul.f32 %v1336, %v1369
    %v1375 = vmul.f32 %v1337, %v1369
    %v1376 = vmul.f32 %v1338, %v1369
    %v1377 = vmul.f32 %v1339, %v1369
    %v1378 = vld [vmem:[%s5 + $0x4] sm:$0x1]
    %v1379 = vlaneseq
    %v1380 = vshrl.u32 %v1379, 7
    %v1381 = vsub.s32 0, %v1380
    %v1382 = vrot.slane %v1378, %v1381
    %v1383 = vadd.f32 %v1370, %v1382
    %v1384 = vadd.f32 %v1371, %v1382
    %v1385 = vadd.f32 %v1372, %v1382
    %v1386 = vadd.f32 %v1373, %v1382
    %v1387 = vadd.f32 %v1374, %v1382
    %v1388 = vadd.f32 %v1375, %v1382
    %v1389 = vadd.f32 %v1376, %v1382
    %v1390 = vadd.f32 %v1377, %v1382
    %v1391 = vmax.f32 %v1383, 0.0
    %v1392 = vmax.f32 %v1384, 0.0
    %v1393 = vmax.f32 %v1385, 0.0
    %v1394 = vmax.f32 %v1386, 0.0
    %v1395 = vmax.f32 %v1387, 0.0
    %v1396 = vmax.f32 %v1388, 0.0
    %v1397 = vmax.f32 %v1389, 0.0
    %v1398 = vmax.f32 %v1390, 0.0
    %v1399 = vmin.f32 %v1391, 6.0
    %v1400 = vmin.f32 %v1392, 6.0
    %v1401 = vmin.f32 %v1393, 6.0
    %v1402 = vmin.f32 %v1394, 6.0
    %v1403 = vmin.f32 %v1395, 6.0
    %v1404 = vmin.f32 %v1396, 6.0
    %v1405 = vmin.f32 %v1397, 6.0
    %v1406 = vmin.f32 %v1398, 6.0
    %1407 = vst [vmem:[#allocation2] sm:$0xff] %v1399
    %1408 = vst [vmem:[#allocation2 + $0x8] sm:$0xff] %v1400
    %1409 = vst [vmem:[#allocation2 + $0x10] sm:$0xff] %v1401
    %1410 = vst [vmem:[#allocation2 + $0x18] sm:$0xff] %v1402
    %1411 = vst [vmem:[#allocation2 + $0x20] sm:$0xff] %v1403
    %1412 = vst [vmem:[#allocation2 + $0x28] sm:$0xff] %v1404
    %1413 = vst [vmem:[#allocation2 + $0x30] sm:$0xff] %v1405
    %1414 = vst [vmem:[#allocation2 + $0x38] sm:$0xff] %v1406
    %v1415 = vld [vmem:[%s6] sm:$0x1]
    %v1416 = vld [vmem:[#allocation2] sm:$0xff]
    %v1417 = vld [vmem:[#allocation2 + $0x8] sm:$0xff]
    %v1418 = vld [vmem:[#allocation2 + $0x10] sm:$0xff]
    %v1419 = vld [vmem:[#allocation2 + $0x18] sm:$0xff]
    %v1420 = vld [vmem:[#allocation2 + $0x20] sm:$0xff]
    %v1421 = vld [vmem:[#allocation2 + $0x28] sm:$0xff]
    %v1422 = vld [vmem:[#allocation2 + $0x30] sm:$0xff]
    %v1423 = vld [vmem:[#allocation2 + $0x38] sm:$0xff]
    %s1424 = sld [smem:[#allocation3]]
    %v1425 = vstv %s1424
    %1426 = vmatprep.subr.mxu0 0.0
    %1427 = vmatpush1.xpose.msra.mxu0 0.0
    %1428 = vmatprep.subr.mxu0 0.0
    %1429 = vmatpush1.xpose.msra.mxu0 0.0
    %1430 = vmatprep.subr.mxu0 0.0
    %1431 = vmatpush1.xpose.msra.mxu0 0.0
    %1432 = vmatprep.subr.mxu0 0.0
    %1433 = vmatpush1.xpose.msra.mxu0 0.0
    %1434 = vmatprep.subr.mxu0 0.0
    %1435 = vmatpush1.xpose.msra.mxu0 0.0
    %1436 = vmatprep.subr.mxu0 0.0
    %1437 = vmatpush1.xpose.msra.mxu0 0.0
    %1438 = vmatprep.subr.mxu0 0.0
    %1439 = vmatpush1.xpose.msra.mxu0 0.0
    %1440 = vmatprep.subr.mxu0 0.0
    %1441 = vmatpush1.xpose.msra.mxu0 0.0
    %1442 = vmatprep.subr.mxu0 0.0
    %1443 = vmatpush1.xpose.msra.mxu0 %v1423
    %1444 = vmatprep.subr.mxu0 0.0
    %1445 = vmatpush1.xpose.msra.mxu0 %v1422
    %1446 = vmatprep.subr.mxu0 0.0
    %1447 = vmatpush1.xpose.msra.mxu0 %v1421
    %1448 = vmatprep.subr.mxu0 0.0
    %1449 = vmatpush1.xpose.msra.mxu0 %v1420
    %1450 = vmatprep.subr.mxu0 0.0
    %1451 = vmatpush1.xpose.msra.mxu0 %v1419
    %1452 = vmatprep.subr.mxu0 0.0
    %1453 = vmatpush1.xpose.msra.mxu0 %v1418
    %1454 = vmatprep.subr.mxu0 0.0
    %1455 = vmatpush1.xpose.msra.mxu0 %v1417
    %1456 = vmatprep.subr.mxu0 0.0
    %1457 = vmatpush1.xpose.msra.mxu0 %v1416
    %1458 = vmatprep.subr.mxu0 0.0
    %1459 = vmatpush2.xpose.msra.mxu0 0.0
    %1460 = vmatprep.subr.mxu0 0.0
    %1461 = vmatpush2.xpose.msra.mxu0 0.0
    %1462 = vmatprep.subr.mxu0 0.0
    %1463 = vmatpush2.xpose.msra.mxu0 0.0
    %1464 = vmatprep.subr.mxu0 0.0
    %1465 = vmatpush2.xpose.msra.mxu0 0.0
    %1466 = vmatprep.subr.mxu0 0.0
    %1467 = vmatpush2.xpose.msra.mxu0 0.0
    %1468 = vmatprep.subr.mxu0 0.0
    %1469 = vmatpush2.xpose.msra.mxu0 0.0
    %1470 = vmatprep.subr.mxu0 0.0
    %1471 = vmatpush2.xpose.msra.mxu0 0.0
    %1472 = vmatprep.subr.mxu0 0.0
    %1473 = vmatpush2.xpose.msra.mxu0 0.0
    %1474 = vmatprep.subr.mxu0 0.0
    %1475 = vmatpush2.xpose.msra.mxu0 0.0
    %1476 = vmatprep.subr.mxu0 0.0
    %1477 = vmatpush2.xpose.msra.mxu0 0.0
    %1478 = vmatprep.subr.mxu0 0.0
    %1479 = vmatpush2.xpose.msra.mxu0 0.0
    %1480 = vmatprep.subr.mxu0 0.0
    %1481 = vmatpush2.xpose.msra.mxu0 0.0
    %1482 = vmatprep.subr.mxu0 0.0
    %1483 = vmatpush2.xpose.msra.mxu0 0.0
    %1484 = vmatprep.subr.mxu0 0.0
    %1485 = vmatpush2.xpose.msra.mxu0 0.0
    %1486 = vmatprep.subr.mxu0 0.0
    %1487 = vmatpush2.xpose.msra.mxu0 0.0
    %1488 = vmatprep.subr.mxu0 0.0
    %1489 = vmatpush2.xpose.msra.mxu0 0.0
    %1490 = vmatprep.mubr.f32.mxu0 0.0
    %1491 = vmatmul.mubr.f32.gmra.mxu0 %v1415
    %v1492 = vpop.f32.mrf.mxu0
    %v1493 = vadd.f32 %v1425, %v1492
    %v1494 = vpop.f32.mrf.mxu0
    %1495 = vdwg.mxu0
    %v1496 = vsub.f32 0.0, %v1493
    %v1497 = vmul.f32 %v1496, 1.442695
    %v1498 = vpow.pop %v1497
    %v1499 = vadd.f32 %v1498, 1.0
    %v1500 = vrcp.pop %v1499
    %v1501 = vadd.f32 %v1500, 0.01
    %v1502 = vld [vmem:[%s8] sm:$0x1]
    %v1503 = vsub.f32 1.0, %v1502
    %v1504 = vmul.f32 %v1503, %v1501
    %v1505 = vsub.f32 1.0, %v1501
    %v1506 = vand.u32 2147483647, %v1505
    %v1507 = vadd.f32 %v1501, %v1506
    %v1508 = vmul.f32 %v1502, %v1507
    %v1509 = vadd.f32 %v1504, %v1508
    %vm1510 = vcmask 516096
    %1511 = vst.msk [vmem:[#allocation7] sm:$0x1] %vm1510, %v1509
    // Predicated region
    $region42: #{tpu_custom_call.1} parent=1 // pred_check
      _
    $region43: #{tpu_custom_call.1} parent=1 // pred_check_branch
      %1513 = sbr.rel (0) target = $region45
    $region44: #{tpu_custom_call.1} parent=1 // pred_region
      %s1515 = ssub.s32 16, 16
      %1516 = vsyncadd [#allocation6], %s1515
      %s1518 = sshll.u32 [#allocation7], 4
      %s1519 = int_to_ptr.vmem [resolvable:$true] %s1518
      %1521 = dma.vmem_to_hbm [thread:$0]  %s1519, 16, %s9, [#allocation6]
    $region45: #{tpu_custom_call.1} parent=1 // pred_fallthru
      _
    // Predicated region
    $region46: #{tpu_custom_call.1} parent=1 // pred_check
      _
    $region47: #{tpu_custom_call.1} parent=1 // pred_check_branch
      %1523 = sbr.rel (0) target = $region49
    $region48: #{tpu_custom_call.1} parent=1 // pred_region
      %1524 = dma.done [#allocation6], 16
    $region49: #{tpu_custom_call.1} parent=1 // pred_fallthru
      _
    %1525 = vsyncpa [#allocation5], 1
    %1526 = vsyncpa [#allocation6], 1

</llo_original>
